<compile_context>
chip_gen: v7x
topology: tpu7x:2x2x1
jax: 0.10.0
libtpu: 0.0.40
codegen_flags: <defaults>
</compile_context>

<pallas_src>
import functools

import jax
import jax.numpy as jnp
import numpy as np
from jax import lax
from jax.experimental import pallas as pl
from jax.experimental.pallas import tpu as pltpu

K = 128  # supported label range: labels must lie in [0, K)


def _round_up(v, m):
    return ((v + m - 1) // m) * m


def _vi_table_kernel(n_ref, x_ref, y_ref, table_ref, *, blocks_per_core,
                     onehot_dtype, acc_dtype):
    c = pl.program_id(0)            # pixel-range split (TensorCore axis on v7x)
    i = pl.program_id(1)            # block within this core's pixel range
    tile = x_ref.shape[1]

    @pl.when(i == 0)
    def _():
        table_ref[...] = jnp.zeros_like(table_ref)

    n = n_ref[0]                    # valid pixel count (SMEM scalar)
    blk = c * blocks_per_core + i   # logical (unclamped) pixel-block index

    # Tail mask on the cheap (1, tile) label vector, not the (K, tile) one-hot:
    # out-of-range pixels get label -1 -> all-zero one-hot column -> zero
    # contribution to the contingency table.
    pix = lax.broadcasted_iota(jnp.int32, (1, tile), 1) + blk * tile
    x = jnp.where(pix < n, x_ref[...], -1)      # (1, tile) int32
    y = y_ref[...]                              # (1, tile) int32

    # One-hots via broadcast compare against a (K, 1) label-id iota
    # (no (K, tile) int32 iota materialized per step).
    ids = lax.broadcasted_iota(jnp.int32, (K, 1), 0)
    oh_x = (x == ids).astype(onehot_dtype)      # (K, tile)
    oh_y = (y == ids).astype(onehot_dtype)      # (K, tile)

    # Contingency counts: contract the pixel (last) axis of both one-hots on
    # the MXU, accumulating into the resident (K, K) output block.
    table_ref[...] += lax.dot_general(
        oh_x, oh_y, (((1,), (1,)), ((), ())),
        preferred_element_type=acc_dtype)


def _ski_vi_tables(x, y, *, onehot_dtype, acc_dtype, tile_max, vmem_bytes,
                   num_cores):
    """Per-core (num_cores, K, K) contingency-count tables."""
    x_flat = x.reshape(1, -1).astype(jnp.int32)
    y_flat = y.reshape(1, -1).astype(jnp.int32)
    n = x_flat.shape[1]

    tile = min(tile_max, _round_up(n, 128))
    blocks = pl.cdiv(n, tile)                    # total pixel blocks
    blocks_per_core = pl.cdiv(blocks, num_cores)
    n_arr = jnp.array([n], dtype=jnp.int32)

    def lbl_map(c, i, n_ref):
        # Clamp so a fully out-of-range block (2nd core with an odd block
        # count) never issues an OOB DMA; its pixels are masked in-kernel.
        return (0, jnp.minimum(c * blocks_per_core + i, blocks - 1))

    kernel = functools.partial(
        _vi_table_kernel, blocks_per_core=blocks_per_core,
        onehot_dtype=onehot_dtype, acc_dtype=acc_dtype)

    return pl.pallas_call(
        kernel,
        out_shape=jax.ShapeDtypeStruct((num_cores, K, K), acc_dtype),
        grid_spec=pltpu.PrefetchScalarGridSpec(
            num_scalar_prefetch=1,
            grid=(num_cores, blocks_per_core),
            in_specs=[pl.BlockSpec((1, tile), lbl_map),
                      pl.BlockSpec((1, tile), lbl_map)],
            out_specs=pl.BlockSpec((None, K, K), lambda c, i, n_ref: (c, 0, 0))),
        compiler_params=pltpu.CompilerParams(
            dimension_semantics=("parallel", "arbitrary"),
            vmem_limit_bytes=vmem_bytes),
    )(n_arr, x_flat, y_flat)


def _entropies_from_tables(tables):
    """[H(y|x), H(x|y)] from summed per-core count tables (tiny 128x128 math)."""
    counts = tables.astype(jnp.float32).sum(axis=0)     # (K, K) joint counts
    total = jnp.maximum(counts.sum(), 1.0)
    pxy = counts / total
    px = pxy.sum(axis=1, keepdims=True)                  # (K, 1)
    py = pxy.sum(axis=0, keepdims=True)                  # (1, K)
    nz = pxy > 0.0
    log_pxy = jnp.log(jnp.where(nz, pxy, 1.0))
    log_px = jnp.log(jnp.where(px > 0.0, px, 1.0))
    log_py = jnp.log(jnp.where(py > 0.0, py, 1.0))
    hygx = -jnp.sum(jnp.where(nz, pxy * (log_pxy - log_px), 0.0))   # H(y|x)
    hxgy = -jnp.sum(jnp.where(nz, pxy * (log_pxy - log_py), 0.0))   # H(x|y)
    return jnp.stack([hygx, hxgy])


def _safe_config():
    # Proven bf16 contraction; works on every TPU generation.
    return dict(onehot_dtype=jnp.bfloat16, acc_dtype=jnp.float32,
                tile_max=8192, vmem_bytes=32 * 1024 * 1024, num_cores=1)


def _fast_config():
    try:
        kind = jax.devices()[0].device_kind.lower()
    except Exception:
        return _safe_config()
    if "v7" in kind or "7x" in kind:
        # v7x: fp8 MXU (~2x bf16), no integer MXU; 64 MiB VMEM + 2 TCs per chip.
        return dict(onehot_dtype=jnp.float8_e4m3fn, acc_dtype=jnp.float32,
                    tile_max=16384, vmem_bytes=48 * 1024 * 1024, num_cores=2)
    if "v5" in kind or "v6" in kind:
        # v5e/v6e: int8 MXU path (2x bf16 rate on v6e) with exact int32 counts.
        return dict(onehot_dtype=jnp.int8, acc_dtype=jnp.int32,
                    tile_max=32768, vmem_bytes=64 * 1024 * 1024, num_cores=1)
    return _safe_config()


def ski_vi_pallas(x, y):
    """Variation-of-information components [H(y|x), H(x|y)] for two label images."""
    try:
        tables = _ski_vi_tables(x, y, **_fast_config())
    except Exception:
        # TODO(synk): int8/fp8 MXU contraction not supported by this chip or
        # toolchain; fall back to the proven bf16 path.
        tables = _ski_vi_tables(x, y, **_safe_config())
    return _entropies_from_tables(tables)


class SKIVILossPallas:
    """JAX/Pallas equivalent of the PyTorch SKIVILoss module (no parameters)."""

    def __call__(self, x, y):
        return ski_vi_pallas(x, y)

    @staticmethod
    def get_short_name():
        return "SKI_VI"

    @staticmethod
    def get_full_name():
        return "Scikit-Image Variation of Information"


def _ski_vi_ref(x, y, k=K):
    """Pure-JAX reference matching skimage.metrics.variation_of_information."""
    xf = x.reshape(-1).astype(jnp.int32)
    yf = y.reshape(-1).astype(jnp.int32)
    n = xf.shape[0]
    table = jnp.zeros((k, k), jnp.float32).at[xf, yf].add(1.0) / n
    px = table.sum(axis=1, keepdims=True)
    py = table.sum(axis=0, keepdims=True)
    nz = table > 0
    log_t = jnp.log(jnp.where(nz, table, 1.0))
    log_px = jnp.log(jnp.where(px > 0, px, 1.0))
    log_py = jnp.log(jnp.where(py > 0, py, 1.0))
    hygx = -jnp.sum(jnp.where(nz, table * (log_t - log_px), 0.0))
    hxgy = -jnp.sum(jnp.where(nz, table * (log_t - log_py), 0.0))
    return jnp.array([hygx, hxgy])


if __name__ == "__main__":
    key = jax.random.PRNGKey(0)
    kx, ky = jax.random.split(key)
    # small label images: batch=2, spatial=16x16, 8 distinct labels
    x = jax.random.randint(kx, (2, 16, 16), 0, 8, dtype=jnp.int32)
    y = jax.random.randint(ky, (2, 16, 16), 0, 8, dtype=jnp.int32)

    loss = SKIVILossPallas()
    out = jax.block_until_ready(loss(x, y))
    ref = jax.block_until_ready(_ski_vi_ref(x, y))

    assert out.shape == (2,), out.shape
    assert np.allclose(np.asarray(out), np.asarray(ref), atol=1e-5, rtol=1e-5), (out, ref)
    print("KERNEL_OK")
</pallas_src>

<mosaic_0001>
module attributes {stable_mosaic.version = 11 : i64} {
  func.func @_vi_table_kernel(%arg0: i32, %arg1: i32, %arg2: memref<1xi32, #tpu.memory_space<smem>>, %arg3: memref<1x512xi32, #tpu.memory_space<vmem>>, %arg4: memref<1x512xi32, #tpu.memory_space<vmem>>, %arg5: memref<1x128x128xf32, #tpu.memory_space<vmem>>) attributes {dimension_semantics = [#tpu.dimension_semantics<parallel>, #tpu.dimension_semantics<arbitrary>], iteration_bounds = array<i64: 1, 1>, scalar_prefetch = 1 : i64, scratch_operands = 0 : i64, tpu.core_type = #tpu.core_type<tc>, window_params = [{transform_indices = @transform_0, window_bounds = array<i64: 1, 512>}, {transform_indices = @transform_1, window_bounds = array<i64: 1, 512>}, {transform_indices = @transform_2, window_bounds = array<i64: 1, 128, 128>}]} {
    %c0_i32 = arith.constant 0 : i32
    %0 = arith.cmpi eq, %arg1, %c0_i32 : i32
    %1 = arith.extui %0 : i1 to i32
    %c0_i32_0 = arith.constant 0 : i32
    %2 = arith.cmpi ne, %1, %c0_i32_0 : i32
    scf.if %2 {
      %cst_11 = arith.constant 0.000000e+00 : f32
      %36 = vector.broadcast %cst_11 : f32 to vector<128x128xf32>
      %c0_12 = arith.constant 0 : index
      %c0_13 = arith.constant 0 : index
      %c0_14 = arith.constant 0 : index
      %37 = vector.load %arg5[%c0_12, %c0_13, %c0_14] : memref<1x128x128xf32, #tpu.memory_space<vmem>>, vector<1x128x128xf32>
      %38 = vector.shape_cast %37 : vector<1x128x128xf32> to vector<128x128xf32>
      %39 = vector.shape_cast %36 : vector<128x128xf32> to vector<1x128x128xf32>
      tpu.vector_store %arg5[%c0_12, %c0_13, %c0_14], %39 {strides = array<i32>} : memref<1x128x128xf32, #tpu.memory_space<vmem>>, vector<1x128x128xf32>,
    } else {
    }
    %c0 = arith.constant 0 : index
    %3 = memref.load %arg2[%c0] : memref<1xi32, #tpu.memory_space<smem>>
    %c1_i32 = arith.constant 1 : i32
    %4 = arith.muli %arg0, %c1_i32 : i32
    %5 = arith.addi %4, %arg1 : i32
    %6 = tpu.iota {dimensions = array<i32: 1>} : vector<1x512xi32>
    %c512_i32 = arith.constant 512 : i32
    %7 = arith.muli %5, %c512_i32 : i32
    %8 = vector.broadcast %7 : i32 to vector<1x512xi32>
    %9 = arith.addi %6, %8 : vector<1x512xi32>
    %10 = vector.broadcast %3 : i32 to vector<1x512xi32>
    %11 = arith.cmpi slt, %9, %10 : vector<1x512xi32>
    %c0_1 = arith.constant 0 : index
    %c0_2 = arith.constant 0 : index
    %12 = vector.load %arg3[%c0_1, %c0_2] : memref<1x512xi32, #tpu.memory_space<vmem>>, vector<1x512xi32>
    %c-1_i32 = arith.constant -1 : i32
    %13 = vector.broadcast %c-1_i32 : i32 to vector<1x512xi32>
    %14 = arith.select %11, %12, %13 : vector<1x512xi1>, vector<1x512xi32>
    %c0_3 = arith.constant 0 : index
    %c0_4 = arith.constant 0 : index
    %15 = vector.load %arg4[%c0_3, %c0_4] : memref<1x512xi32, #tpu.memory_space<vmem>>, vector<1x512xi32>
    %16 = tpu.iota {dimensions = array<i32: 0>} : vector<128x1xi32>
    %17 = vector.broadcast %14 : vector<1x512xi32> to vector<128x512xi32>
    %18 = vector.broadcast %16 : vector<128x1xi32> to vector<128x512xi32>
    %19 = arith.cmpi eq, %17, %18 : vector<128x512xi32>
    %20 = arith.extui %19 : vector<128x512xi1> to vector<128x512xi32>
    %21 = arith.sitofp %20 : vector<128x512xi32> to vector<128x512xf32>
    %22 = arith.truncf %21 : vector<128x512xf32> to vector<128x512xbf16>
    %23 = vector.broadcast %15 : vector<1x512xi32> to vector<128x512xi32>
    %24 = vector.broadcast %16 : vector<128x1xi32> to vector<128x512xi32>
    %25 = arith.cmpi eq, %23, %24 : vector<128x512xi32>
    %26 = arith.extui %25 : vector<128x512xi1> to vector<128x512xi32>
    %27 = arith.sitofp %26 : vector<128x512xi32> to vector<128x512xf32>
    %28 = arith.truncf %27 : vector<128x512xf32> to vector<128x512xbf16>
    %c0_5 = arith.constant 0 : index
    %c0_6 = arith.constant 0 : index
    %c0_7 = arith.constant 0 : index
    %29 = vector.load %arg5[%c0_5, %c0_6, %c0_7] : memref<1x128x128xf32, #tpu.memory_space<vmem>>, vector<1x128x128xf32>
    %30 = vector.shape_cast %29 : vector<1x128x128xf32> to vector<128x128xf32>
    %cst = arith.constant dense<0.000000e+00> : vector<128x128xf32>
    %31 = tpu.matmul %22, %28, %cst {dimension_numbers = #tpu.dot_dimension_numbers<[1], [1], [0], [0], [0, 0, 1, 0], [], []>} : vector<128x512xbf16>, vector<128x512xbf16>, vector<128x128xf32> -> vector<128x128xf32>
    %32 = arith.addf %30, %31 : vector<128x128xf32>
    %c0_8 = arith.constant 0 : index
    %c0_9 = arith.constant 0 : index
    %c0_10 = arith.constant 0 : index
    %33 = vector.load %arg5[%c0_8, %c0_9, %c0_10] : memref<1x128x128xf32, #tpu.memory_space<vmem>>, vector<1x128x128xf32>
    %34 = vector.shape_cast %33 : vector<1x128x128xf32> to vector<128x128xf32>
    %35 = vector.shape_cast %32 : vector<128x128xf32> to vector<1x128x128xf32>
    tpu.vector_store %arg5[%c0_8, %c0_9, %c0_10], %35 {strides = array<i32>} : memref<1x128x128xf32, #tpu.memory_space<vmem>>, vector<1x128x128xf32>,
    return
  }
  func.func @transform_0(%arg0: i32, %arg1: i32, %arg2: memref<1xi32, #tpu.memory_space<smem>>) -> (i32, i32) {
    %c1_i32 = arith.constant 1 : i32
    %0 = arith.muli %arg0, %c1_i32 : i32
    %1 = arith.addi %0, %arg1 : i32
    %c0_i32 = arith.constant 0 : i32
    %2 = arith.minsi %1, %c0_i32 : i32
    %c0_i32_0 = arith.constant 0 : i32
    %c0_i32_1 = arith.constant 0 : i32
    return %c0_i32_0, %2 : i32, i32
  }
  func.func @transform_1(%arg0: i32, %arg1: i32, %arg2: memref<1xi32, #tpu.memory_space<smem>>) -> (i32, i32) {
    %c1_i32 = arith.constant 1 : i32
    %0 = arith.muli %arg0, %c1_i32 : i32
    %1 = arith.addi %0, %arg1 : i32
    %c0_i32 = arith.constant 0 : i32
    %2 = arith.minsi %1, %c0_i32 : i32
    %c0_i32_0 = arith.constant 0 : i32
    %c0_i32_1 = arith.constant 0 : i32
    return %c0_i32_0, %2 : i32, i32
  }
  func.func @transform_2(%arg0: i32, %arg1: i32, %arg2: memref<1xi32, #tpu.memory_space<smem>>) -> (i32, i32, i32) {
    %c0_i32 = arith.constant 0 : i32
    %c0_i32_0 = arith.constant 0 : i32
    %c0_i32_1 = arith.constant 0 : i32
    return %arg0, %c0_i32, %c0_i32_0 : i32, i32, i32
  }
}

module attributes {stable_mosaic.version = 11 : i64} {
  func.func @_vi_table_kernel(%arg0: i32, %arg1: i32, %arg2: memref<1xi32, #tpu.memory_space<smem>>, %arg3: memref<1x512xi32, #tpu.memory_space<vmem>>, %arg4: memref<1x512xi32, #tpu.memory_space<vmem>>, %arg5: memref<1x128x128xf32, #tpu.memory_space<vmem>>) attributes {dimension_semantics = [#tpu.dimension_semantics<parallel>, #tpu.dimension_semantics<arbitrary>], iteration_bounds = array<i64: 1, 1>, scalar_prefetch = 1 : i64, scratch_operands = 0 : i64, tpu.core_type = #tpu.core_type<tc>, window_params = [{transform_indices = @transform_0, window_bounds = array<i64: 1, 512>}, {transform_indices = @transform_1, window_bounds = array<i64: 1, 512>}, {transform_indices = @transform_2, window_bounds = array<i64: 1, 128, 128>}]} {
    %c0_i32 = arith.constant 0 : i32
    %0 = arith.cmpi eq, %arg1, %c0_i32 : i32
    %1 = arith.extui %0 : i1 to i32
    %c0_i32_0 = arith.constant 0 : i32
    %2 = arith.cmpi ne, %1, %c0_i32_0 : i32
    scf.if %2 {
      %cst_11 = arith.constant 0.000000e+00 : f32
      %36 = vector.broadcast %cst_11 : f32 to vector<128x128xf32>
      %c0_12 = arith.constant 0 : index
      %c0_13 = arith.constant 0 : index
      %c0_14 = arith.constant 0 : index
      %37 = vector.load %arg5[%c0_12, %c0_13, %c0_14] : memref<1x128x128xf32, #tpu.memory_space<vmem>>, vector<1x128x128xf32>
      %38 = vector.shape_cast %37 : vector<1x128x128xf32> to vector<128x128xf32>
      %39 = vector.shape_cast %36 : vector<128x128xf32> to vector<1x128x128xf32>
      tpu.vector_store %arg5[%c0_12, %c0_13, %c0_14], %39 {strides = array<i32>} : memref<1x128x128xf32, #tpu.memory_space<vmem>>, vector<1x128x128xf32>,
    } else {
    }
    %c0 = arith.constant 0 : index
    %3 = memref.load %arg2[%c0] : memref<1xi32, #tpu.memory_space<smem>>
    %c1_i32 = arith.constant 1 : i32
    %4 = arith.muli %arg0, %c1_i32 : i32
    %5 = arith.addi %4, %arg1 : i32
    %6 = tpu.iota {dimensions = array<i32: 1>} : vector<1x512xi32>
    %c512_i32 = arith.constant 512 : i32
    %7 = arith.muli %5, %c512_i32 : i32
    %8 = vector.broadcast %7 : i32 to vector<1x512xi32>
    %9 = arith.addi %6, %8 : vector<1x512xi32>
    %10 = vector.broadcast %3 : i32 to vector<1x512xi32>
    %11 = arith.cmpi slt, %9, %10 : vector<1x512xi32>
    %c0_1 = arith.constant 0 : index
    %c0_2 = arith.constant 0 : index
    %12 = vector.load %arg3[%c0_1, %c0_2] : memref<1x512xi32, #tpu.memory_space<vmem>>, vector<1x512xi32>
    %c-1_i32 = arith.constant -1 : i32
    %13 = vector.broadcast %c-1_i32 : i32 to vector<1x512xi32>
    %14 = arith.select %11, %12, %13 : vector<1x512xi1>, vector<1x512xi32>
    %c0_3 = arith.constant 0 : index
    %c0_4 = arith.constant 0 : index
    %15 = vector.load %arg4[%c0_3, %c0_4] : memref<1x512xi32, #tpu.memory_space<vmem>>, vector<1x512xi32>
    %16 = tpu.iota {dimensions = array<i32: 0>} : vector<128x1xi32>
    %17 = vector.broadcast %14 : vector<1x512xi32> to vector<128x512xi32>
    %18 = vector.broadcast %16 : vector<128x1xi32> to vector<128x512xi32>
    %19 = arith.cmpi eq, %17, %18 : vector<128x512xi32>
    %20 = arith.extui %19 : vector<128x512xi1> to vector<128x512xi32>
    %21 = arith.sitofp %20 : vector<128x512xi32> to vector<128x512xf32>
    %22 = arith.truncf %21 : vector<128x512xf32> to vector<128x512xbf16>
    %23 = vector.broadcast %15 : vector<1x512xi32> to vector<128x512xi32>
    %24 = vector.broadcast %16 : vector<128x1xi32> to vector<128x512xi32>
    %25 = arith.cmpi eq, %23, %24 : vector<128x512xi32>
    %26 = arith.extui %25 : vector<128x512xi1> to vector<128x512xi32>
    %27 = arith.sitofp %26 : vector<128x512xi32> to vector<128x512xf32>
    %28 = arith.truncf %27 : vector<128x512xf32> to vector<128x512xbf16>
    %c0_5 = arith.constant 0 : index
    %c0_6 = arith.constant 0 : index
    %c0_7 = arith.constant 0 : index
    %29 = vector.load %arg5[%c0_5, %c0_6, %c0_7] : memref<1x128x128xf32, #tpu.memory_space<vmem>>, vector<1x128x128xf32>
    %30 = vector.shape_cast %29 : vector<1x128x128xf32> to vector<128x128xf32>
    %cst = arith.constant dense<0.000000e+00> : vector<128x128xf32>
    %31 = tpu.matmul %22, %28, %cst {dimension_numbers = #tpu.dot_dimension_numbers<[1], [1], [0], [0], [0, 0, 1, 0], [], []>} : vector<128x512xbf16>, vector<128x512xbf16>, vector<128x128xf32> -> vector<128x128xf32>
    %32 = arith.addf %30, %31 : vector<128x128xf32>
    %c0_8 = arith.constant 0 : index
    %c0_9 = arith.constant 0 : index
    %c0_10 = arith.constant 0 : index
    %33 = vector.load %arg5[%c0_8, %c0_9, %c0_10] : memref<1x128x128xf32, #tpu.memory_space<vmem>>, vector<1x128x128xf32>
    %34 = vector.shape_cast %33 : vector<1x128x128xf32> to vector<128x128xf32>
    %35 = vector.shape_cast %32 : vector<128x128xf32> to vector<1x128x128xf32>
    tpu.vector_store %arg5[%c0_8, %c0_9, %c0_10], %35 {strides = array<i32>} : memref<1x128x128xf32, #tpu.memory_space<vmem>>, vector<1x128x128xf32>,
    return
  }
  func.func @transform_0(%arg0: i32, %arg1: i32, %arg2: memref<1xi32, #tpu.memory_space<smem>>) -> (i32, i32) {
    %c1_i32 = arith.constant 1 : i32
    %0 = arith.muli %arg0, %c1_i32 : i32
    %1 = arith.addi %0, %arg1 : i32
    %c0_i32 = arith.constant 0 : i32
    %2 = arith.minsi %1, %c0_i32 : i32
    %c0_i32_0 = arith.constant 0 : i32
    %c0_i32_1 = arith.constant 0 : i32
    return %c0_i32_0, %2 : i32, i32
  }
  func.func @transform_1(%arg0: i32, %arg1: i32, %arg2: memref<1xi32, #tpu.memory_space<smem>>) -> (i32, i32) {
    %c1_i32 = arith.constant 1 : i32
    %0 = arith.muli %arg0, %c1_i32 : i32
    %1 = arith.addi %0, %arg1 : i32
    %c0_i32 = arith.constant 0 : i32
    %2 = arith.minsi %1, %c0_i32 : i32
    %c0_i32_0 = arith.constant 0 : i32
    %c0_i32_1 = arith.constant 0 : i32
    return %c0_i32_0, %2 : i32, i32
  }
  func.func @transform_2(%arg0: i32, %arg1: i32, %arg2: memref<1xi32, #tpu.memory_space<smem>>) -> (i32, i32, i32) {
    %c0_i32 = arith.constant 0 : i32
    %c0_i32_0 = arith.constant 0 : i32
    %c0_i32_1 = arith.constant 0 : i32
    return %arg0, %c0_i32, %c0_i32_0 : i32, i32, i32
  }
}

</mosaic_0001>

<llo_original>
// kernel: tpu_custom_call.1
$region0: #{tpu_custom_call.1}
  #allocation0 [shape = 'u32[]', space=smem, size = 0x4, offset = 0x4, fixed_abs, tag = 'smem constant byte address 0x4 - core index']
  #allocation1 [shape = 'u32[144,128]{1,0:T(1,128)}', space=vmem, size = 0x12000, scoped, tag = 'internal scratch']
  #allocation2 [shape = 's32[1]{0}', space=sflag, size = 0x4, scoped, tag = 'scoped memory for tpu_custom_call.1']
  #allocation3 [shape = 's32[1]{0:T(128)S(6)}', space=smem, size = 0x200, scoped, tag = 'prefetched SMEM operand 0']
  %s0 = inlined_call_operand.<no memory space> [shape: s32[1], index: 0, kind: input, shape index: {}]
  %s1 = inlined_call_operand.hbm [shape: s32[1,512], index: 1, kind: input, shape index: {}]
  %s2 = inlined_call_operand.vmem [shape: s32[1,512], index: 2, kind: input, shape index: {}]
  %s3 = inlined_call_operand.hbm [shape: f32[1,128,128], index: 3, kind: output, shape index: {}]
  %s4 = sld [smem:[#allocation0]]
  $region26: #{tpu_custom_call.1} parent=0
    _
  %s6 = ssub.s32 1, %s4
  %s7 = scalar_select 0, %s6, %s4
  %8 = sst [smem:[#allocation3]] %s0
  $region1: #{tpu_custom_call.1} parent=0
    #allocation4 [shape = 'u8[2048]{0}', space=vmem, size = 0x800, scoped, tag = 'input window, operand 1, single buffered']
    #allocation5 [shape = 's32[1]{0}', space=sflag, size = 0x4, scoped, tag = 'scoped memory for tpu_custom_call.1']
    #allocation6 [shape = 's32[1]{0}', space=sflag, size = 0x4, scoped, tag = 'scoped memory for tpu_custom_call.1']
    #allocation7 [shape = 'u8[65536]{0}', space=vmem, size = 0x10000, scoped, tag = 'output window, operand 0, single buffered']
    %9 = vsyncpa [#allocation5], 0
    %10 = vsyncpa [#allocation6], 0
    // Predicated region
    $region2: #{tpu_custom_call.1} parent=1 // pred_check
      _
    $region3: #{tpu_custom_call.1} parent=1 // pred_check_branch
      %12 = sbr.rel (0) target = $region5
    $region4: #{tpu_custom_call.1} parent=1 // pred_region
      %s13 = sadd.s32 0, 0
      %p14 = scmp.lt.s32.totalorder %s13, 0
      %s15 = scalar_select %p14, %s13, 0
      %s16 = smul.u32 4, %s15
      %s18 = ssub.s32 64, 64
      %19 = vsyncadd [#allocation5], %s18
      %s20 = smul.addr %s16, 16
      %s21 = scalar_lea.hbm %s1, %s20
      %s23 = sshll.u32 [#allocation4], 4
      %s24 = int_to_ptr.vmem [resolvable:$true] %s23
      %26 = dma.hbm_to_vmem [thread:$0]  %s21, 64, %s24, [#allocation5]
    $region5: #{tpu_custom_call.1} parent=1 // pred_fallthru
      _
    // Predicated region
    $region6: #{tpu_custom_call.1} parent=1 // pred_check
      _
    $region7: #{tpu_custom_call.1} parent=1 // pred_check_branch
      %28 = sbr.rel (0) target = $region9
    $region8: #{tpu_custom_call.1} parent=1 // pred_region
      %s29 = sadd.s32 0, 0
      %p30 = scmp.lt.s32.totalorder %s29, 0
      %s31 = scalar_select %p30, %s29, 0
      %s32 = smul.u32 4, %s31
      %p33 = scmp.lt.s32.totalorder %s32, 3
      %s34 = scalar_select %p33, %s32, 3
      %s35 = scalar_lea.vmem %s2, %s34
      %s36 = sadd.s32 0, 0
      %p37 = scmp.lt.s32.totalorder %s36, 0
      %s38 = scalar_select %p37, %s36, 0
      %s39 = smul.u32 4, %s38
    $region9: #{tpu_custom_call.1} parent=1 // pred_fallthru
      _
    // Predicated region
    $region10: #{tpu_custom_call.1} parent=1 // pred_check
      _
    $region11: #{tpu_custom_call.1} parent=1 // pred_check_branch
      %41 = sbr.rel (0) target = $region13
    $region12: #{tpu_custom_call.1} parent=1 // pred_region
      %42 = dma.done [#allocation5], 64
    $region13: #{tpu_custom_call.1} parent=1 // pred_fallthru
      _
    %s43 = sadd.s32 0, 0
    %p44 = scmp.lt.s32.totalorder %s43, 0
    %s45 = scalar_select %p44, %s43, 0
    %s46 = smul.u32 4, %s45
    %p47 = scmp.lt.s32.totalorder %s46, 3
    %s48 = scalar_select %p47, %s46, 3
    %s49 = scalar_lea.vmem %s2, %s48
    %s50 = sadd.s32 0, 0
    %p51 = scmp.lt.s32.totalorder %s50, 0
    %s52 = scalar_select %p51, %s50, 0
    %s53 = smul.u32 4, %s52
    %s54 = sadd.s32 0, 0
    %p55 = scmp.lt.s32.totalorder %s54, 0
    %s56 = scalar_select %p55, %s54, 0
    %s57 = smul.u32 4, %s56
    %p58 = scmp.lt.s32.totalorder %s57, 3
    %s59 = scalar_select %p58, %s57, 3
    %s60 = scalar_lea.vmem %s2, %s59
    %s61 = sadd.s32 0, 0
    %p62 = scmp.lt.s32.totalorder %s61, 0
    %s63 = scalar_select %p62, %s61, 0
    %s64 = smul.u32 4, %s63
    %p66 = scmp.eq.s32.totalorder 0, 0
    // Predicated region
    $region14: #{tpu_custom_call.1} parent=1 // pred_check
      %p67 = pneg %p66
    $region15: #{tpu_custom_call.1} parent=1 // pred_check_branch
      %69 = sbr.rel (%p67) target = $region17
    $region16: #{tpu_custom_call.1} parent=1 // pred_region
      %70 = vst [vmem:[#allocation7] sm:$0xff] 0.0
      %71 = vst [vmem:[#allocation7 + $0x8] sm:$0xff] 0.0
      %72 = vst [vmem:[#allocation7 + $0x10] sm:$0xff] 0.0
      %73 = vst [vmem:[#allocation7 + $0x18] sm:$0xff] 0.0
      %74 = vst [vmem:[#allocation7 + $0x20] sm:$0xff] 0.0
      %75 = vst [vmem:[#allocation7 + $0x28] sm:$0xff] 0.0
      %76 = vst [vmem:[#allocation7 + $0x30] sm:$0xff] 0.0
      %77 = vst [vmem:[#allocation7 + $0x38] sm:$0xff] 0.0
      %78 = vst [vmem:[#allocation7 + $0x40] sm:$0xff] 0.0
      %79 = vst [vmem:[#allocation7 + $0x48] sm:$0xff] 0.0
      %80 = vst [vmem:[#allocation7 + $0x50] sm:$0xff] 0.0
      %81 = vst [vmem:[#allocation7 + $0x58] sm:$0xff] 0.0
      %82 = vst [vmem:[#allocation7 + $0x60] sm:$0xff] 0.0
      %83 = vst [vmem:[#allocation7 + $0x68] sm:$0xff] 0.0
      %84 = vst [vmem:[#allocation7 + $0x70] sm:$0xff] 0.0
      %85 = vst [vmem:[#allocation7 + $0x78] sm:$0xff] 0.0
    $region17: #{tpu_custom_call.1} parent=1 // pred_fallthru
      _
    %s86 = sld [smem:[#allocation3]]
    %s87 = sadd.s32 0, 0
    %v88 = vlaneseq
    %v89 = vand.u32 %v88, 127
    %v90 = vadd.s32 %v89, 128
    %v91 = vadd.s32 %v89, 256
    %v92 = vadd.s32 %v89, 384
    %s93 = smul.u32 %s87, 512
    %v94 = vstv %s93
    %v95 = vadd.s32 %v89, %v94
    %v96 = vadd.s32 %v90, %v94
    %v97 = vadd.s32 %v91, %v94
    %v98 = vadd.s32 %v92, %v94
    %v99 = vstv %s86
    %vm100 = vcmp.lt.s32.totalorder %v95, %v99
    %vm101 = vcmp.lt.s32.totalorder %v96, %v99
    %vm102 = vcmp.lt.s32.totalorder %v97, %v99
    %vm103 = vcmp.lt.s32.totalorder %v98, %v99
    %v104 = vld [vmem:[#allocation4] sm:$0xf]
    %v105 = vlaneseq
    %v106 = vshrl.u32 %v105, 7
    %v107 = vsub.s32 0, %v106
    %v108 = vrot.slane %v104, %v107
    %v109 = vlaneseq
    %v110 = vshrl.u32 %v109, 7
    %v111 = vsub.s32 1, %v110
    %v112 = vrot.slane %v104, %v111
    %v113 = vlaneseq
    %v114 = vshrl.u32 %v113, 7
    %v115 = vsub.s32 2, %v114
    %v116 = vrot.slane %v104, %v115
    %v117 = vlaneseq
    %v118 = vshrl.u32 %v117, 7
    %v119 = vsub.s32 3, %v118
    %v120 = vrot.slane %v104, %v119
    %v121 = vsel %vm100, %v108, 4294967295
    %v122 = vsel %vm101, %v112, 4294967295
    %v123 = vsel %vm102, %v116, 4294967295
    %v124 = vsel %vm103, %v120, 4294967295
    %v125 = vld [vmem:[%s60] sm:$0xf]
    %v126 = vlaneseq
    %v127 = vshrl.u32 %v126, 7
    %v128 = vadd.s32 %v127, 8
    %v129 = vadd.s32 %v127, 16
    %v130 = vadd.s32 %v127, 24
    %v131 = vadd.s32 %v127, 32
    %v132 = vadd.s32 %v127, 40
    %v133 = vadd.s32 %v127, 48
    %v134 = vadd.s32 %v127, 56
    %v135 = vadd.s32 %v127, 64
    %v136 = vadd.s32 %v127, 72
    %v137 = vadd.s32 %v127, 80
    %v138 = vadd.s32 %v127, 88
    %v139 = vadd.s32 %v127, 96
    %v140 = vadd.s32 %v127, 104
    %v141 = vadd.s32 %v127, 112
    %v142 = vadd.s32 %v127, 120
    %v143 = vlaneseq
    %v144 = vshrl.u32 %v143, 7
    %v145 = vsub.s32 0, %v144
    %v146 = vrot.slane %v121, %v145
    %v147 = vlaneseq
    %v148 = vshrl.u32 %v147, 7
    %v149 = vsub.s32 0, %v148
    %v150 = vrot.slane %v122, %v149
    %v151 = vlaneseq
    %v152 = vshrl.u32 %v151, 7
    %v153 = vsub.s32 0, %v152
    %v154 = vrot.slane %v123, %v153
    %v155 = vlaneseq
    %v156 = vshrl.u32 %v155, 7
    %v157 = vsub.s32 0, %v156
    %v158 = vrot.slane %v124, %v157
    %vm159 = vcmp.eq.s32.totalorder %v146, %v127
    %vm160 = vcmp.eq.s32.totalorder %v150, %v127
    %vm161 = vcmp.eq.s32.totalorder %v154, %v127
    %vm162 = vcmp.eq.s32.totalorder %v158, %v127
    %vm163 = vcmp.eq.s32.totalorder %v146, %v128
    %vm164 = vcmp.eq.s32.totalorder %v150, %v128
    %vm165 = vcmp.eq.s32.totalorder %v154, %v128
    %vm166 = vcmp.eq.s32.totalorder %v158, %v128
    %vm167 = vcmp.eq.s32.totalorder %v146, %v129
    %vm168 = vcmp.eq.s32.totalorder %v150, %v129
    %vm169 = vcmp.eq.s32.totalorder %v154, %v129
    %vm170 = vcmp.eq.s32.totalorder %v158, %v129
    %vm171 = vcmp.eq.s32.totalorder %v146, %v130
    %vm172 = vcmp.eq.s32.totalorder %v150, %v130
    %vm173 = vcmp.eq.s32.totalorder %v154, %v130
    %vm174 = vcmp.eq.s32.totalorder %v158, %v130
    %vm175 = vcmp.eq.s32.totalorder %v146, %v131
    %vm176 = vcmp.eq.s32.totalorder %v150, %v131
    %vm177 = vcmp.eq.s32.totalorder %v154, %v131
    %vm178 = vcmp.eq.s32.totalorder %v158, %v131
    %vm179 = vcmp.eq.s32.totalorder %v146, %v132
    %vm180 = vcmp.eq.s32.totalorder %v150, %v132
    %vm181 = vcmp.eq.s32.totalorder %v154, %v132
    %vm182 = vcmp.eq.s32.totalorder %v158, %v132
    %vm183 = vcmp.eq.s32.totalorder %v146, %v133
    %vm184 = vcmp.eq.s32.totalorder %v150, %v133
    %vm185 = vcmp.eq.s32.totalorder %v154, %v133
    %vm186 = vcmp.eq.s32.totalorder %v158, %v133
    %vm187 = vcmp.eq.s32.totalorder %v146, %v134
    %vm188 = vcmp.eq.s32.totalorder %v150, %v134
    %vm189 = vcmp.eq.s32.totalorder %v154, %v134
    %vm190 = vcmp.eq.s32.totalorder %v158, %v134
    %vm191 = vcmp.eq.s32.totalorder %v146, %v135
    %vm192 = vcmp.eq.s32.totalorder %v150, %v135
    %vm193 = vcmp.eq.s32.totalorder %v154, %v135
    %vm194 = vcmp.eq.s32.totalorder %v158, %v135
    %vm195 = vcmp.eq.s32.totalorder %v146, %v136
    %vm196 = vcmp.eq.s32.totalorder %v150, %v136
    %vm197 = vcmp.eq.s32.totalorder %v154, %v136
    %vm198 = vcmp.eq.s32.totalorder %v158, %v136
    %vm199 = vcmp.eq.s32.totalorder %v146, %v137
    %vm200 = vcmp.eq.s32.totalorder %v150, %v137
    %vm201 = vcmp.eq.s32.totalorder %v154, %v137
    %vm202 = vcmp.eq.s32.totalorder %v158, %v137
    %vm203 = vcmp.eq.s32.totalorder %v146, %v138
    %vm204 = vcmp.eq.s32.totalorder %v150, %v138
    %vm205 = vcmp.eq.s32.totalorder %v154, %v138
    %vm206 = vcmp.eq.s32.totalorder %v158, %v138
    %vm207 = vcmp.eq.s32.totalorder %v146, %v139
    %vm208 = vcmp.eq.s32.totalorder %v150, %v139
    %vm209 = vcmp.eq.s32.totalorder %v154, %v139
    %vm210 = vcmp.eq.s32.totalorder %v158, %v139
    %vm211 = vcmp.eq.s32.totalorder %v146, %v140
    %vm212 = vcmp.eq.s32.totalorder %v150, %v140
    %vm213 = vcmp.eq.s32.totalorder %v154, %v140
    %vm214 = vcmp.eq.s32.totalorder %v158, %v140
    %vm215 = vcmp.eq.s32.totalorder %v146, %v141
    %vm216 = vcmp.eq.s32.totalorder %v150, %v141
    %vm217 = vcmp.eq.s32.totalorder %v154, %v141
    %vm218 = vcmp.eq.s32.totalorder %v158, %v141
    %vm219 = vcmp.eq.s32.totalorder %v146, %v142
    %vm220 = vcmp.eq.s32.totalorder %v150, %v142
    %vm221 = vcmp.eq.s32.totalorder %v154, %v142
    %vm222 = vcmp.eq.s32.totalorder %v158, %v142
    %v223 = vsel %vm159, 1, 0
    %v224 = vsel %vm160, 1, 0
    %v225 = vsel %vm161, 1, 0
    %v226 = vsel %vm162, 1, 0
    %v227 = vsel %vm163, 1, 0
    %v228 = vsel %vm164, 1, 0
    %v229 = vsel %vm165, 1, 0
    %v230 = vsel %vm166, 1, 0
    %v231 = vsel %vm167, 1, 0
    %v232 = vsel %vm168, 1, 0
    %v233 = vsel %vm169, 1, 0
    %v234 = vsel %vm170, 1, 0
    %v235 = vsel %vm171, 1, 0
    %v236 = vsel %vm172, 1, 0
    %v237 = vsel %vm173, 1, 0
    %v238 = vsel %vm174, 1, 0
    %v239 = vsel %vm175, 1, 0
    %v240 = vsel %vm176, 1, 0
    %v241 = vsel %vm177, 1, 0
    %v242 = vsel %vm178, 1, 0
    %v243 = vsel %vm179, 1, 0
    %v244 = vsel %vm180, 1, 0
    %v245 = vsel %vm181, 1, 0
    %v246 = vsel %vm182, 1, 0
    %v247 = vsel %vm183, 1, 0
    %v248 = vsel %vm184, 1, 0
    %v249 = vsel %vm185, 1, 0
    %v250 = vsel %vm186, 1, 0
    %v251 = vsel %vm187, 1, 0
    %v252 = vsel %vm188, 1, 0
    %v253 = vsel %vm189, 1, 0
    %v254 = vsel %vm190, 1, 0
    %v255 = vsel %vm191, 1, 0
    %v256 = vsel %vm192, 1, 0
    %v257 = vsel %vm193, 1, 0
    %v258 = vsel %vm194, 1, 0
    %v259 = vsel %vm195, 1, 0
    %v260 = vsel %vm196, 1, 0
    %v261 = vsel %vm197, 1, 0
    %v262 = vsel %vm198, 1, 0
    %v263 = vsel %vm199, 1, 0
    %v264 = vsel %vm200, 1, 0
    %v265 = vsel %vm201, 1, 0
    %v266 = vsel %vm202, 1, 0
    %v267 = vsel %vm203, 1, 0
    %v268 = vsel %vm204, 1, 0
    %v269 = vsel %vm205, 1, 0
    %v270 = vsel %vm206, 1, 0
    %v271 = vsel %vm207, 1, 0
    %v272 = vsel %vm208, 1, 0
    %v273 = vsel %vm209, 1, 0
    %v274 = vsel %vm210, 1, 0
    %v275 = vsel %vm211, 1, 0
    %v276 = vsel %vm212, 1, 0
    %v277 = vsel %vm213, 1, 0
    %v278 = vsel %vm214, 1, 0
    %v279 = vsel %vm215, 1, 0
    %v280 = vsel %vm216, 1, 0
    %v281 = vsel %vm217, 1, 0
    %v282 = vsel %vm218, 1, 0
    %v283 = vsel %vm219, 1, 0
    %v284 = vsel %vm220, 1, 0
    %v285 = vsel %vm221, 1, 0
    %v286 = vsel %vm222, 1, 0
    %v287 = vcvt.s32.f32 %v223
    %v288 = vcvt.s32.f32 %v224
    %v289 = vcvt.s32.f32 %v225
    %v290 = vcvt.s32.f32 %v226
    %v291 = vcvt.s32.f32 %v227
    %v292 = vcvt.s32.f32 %v228
    %v293 = vcvt.s32.f32 %v229
    %v294 = vcvt.s32.f32 %v230
    %v295 = vcvt.s32.f32 %v231
    %v296 = vcvt.s32.f32 %v232
    %v297 = vcvt.s32.f32 %v233
    %v298 = vcvt.s32.f32 %v234
    %v299 = vcvt.s32.f32 %v235
    %v300 = vcvt.s32.f32 %v236
    %v301 = vcvt.s32.f32 %v237
    %v302 = vcvt.s32.f32 %v238
    %v303 = vcvt.s32.f32 %v239
    %v304 = vcvt.s32.f32 %v240
    %v305 = vcvt.s32.f32 %v241
    %v306 = vcvt.s32.f32 %v242
    %v307 = vcvt.s32.f32 %v243
    %v308 = vcvt.s32.f32 %v244
    %v309 = vcvt.s32.f32 %v245
    %v310 = vcvt.s32.f32 %v246
    %v311 = vcvt.s32.f32 %v247
    %v312 = vcvt.s32.f32 %v248
    %v313 = vcvt.s32.f32 %v249
    %v314 = vcvt.s32.f32 %v250
    %v315 = vcvt.s32.f32 %v251
    %v316 = vcvt.s32.f32 %v252
    %v317 = vcvt.s32.f32 %v253
    %v318 = vcvt.s32.f32 %v254
    %v319 = vcvt.s32.f32 %v255
    %v320 = vcvt.s32.f32 %v256
    %v321 = vcvt.s32.f32 %v257
    %v322 = vcvt.s32.f32 %v258
    %v323 = vcvt.s32.f32 %v259
    %v324 = vcvt.s32.f32 %v260
    %v325 = vcvt.s32.f32 %v261
    %v326 = vcvt.s32.f32 %v262
    %v327 = vcvt.s32.f32 %v263
    %v328 = vcvt.s32.f32 %v264
    %v329 = vcvt.s32.f32 %v265
    %v330 = vcvt.s32.f32 %v266
    %v331 = vcvt.s32.f32 %v267
    %v332 = vcvt.s32.f32 %v268
    %v333 = vcvt.s32.f32 %v269
    %v334 = vcvt.s32.f32 %v270
    %v335 = vcvt.s32.f32 %v271
    %v336 = vcvt.s32.f32 %v272
    %v337 = vcvt.s32.f32 %v273
    %v338 = vcvt.s32.f32 %v274
    %v339 = vcvt.s32.f32 %v275
    %v340 = vcvt.s32.f32 %v276
    %v341 = vcvt.s32.f32 %v277
    %v342 = vcvt.s32.f32 %v278
    %v343 = vcvt.s32.f32 %v279
    %v344 = vcvt.s32.f32 %v280
    %v345 = vcvt.s32.f32 %v281
    %v346 = vcvt.s32.f32 %v282
    %v347 = vcvt.s32.f32 %v283
    %v348 = vcvt.s32.f32 %v284
    %v349 = vcvt.s32.f32 %v285
    %v350 = vcvt.s32.f32 %v286
    %v351 = vpack.c.bf16 %v291, %v287
    %v352 = vpack.c.bf16 %v292, %v288
    %v353 = vpack.c.bf16 %v293, %v289
    %v354 = vpack.c.bf16 %v294, %v290
    %v355 = vpack.c.bf16 %v299, %v295
    %v356 = vpack.c.bf16 %v300, %v296
    %v357 = vpack.c.bf16 %v301, %v297
    %v358 = vpack.c.bf16 %v302, %v298
    %v359 = vpack.c.bf16 %v307, %v303
    %v360 = vpack.c.bf16 %v308, %v304
    %v361 = vpack.c.bf16 %v309, %v305
    %v362 = vpack.c.bf16 %v310, %v306
    %v363 = vpack.c.bf16 %v315, %v311
    %v364 = vpack.c.bf16 %v316, %v312
    %v365 = vpack.c.bf16 %v317, %v313
    %v366 = vpack.c.bf16 %v318, %v314
    %v367 = vpack.c.bf16 %v323, %v319
    %v368 = vpack.c.bf16 %v324, %v320
    %v369 = vpack.c.bf16 %v325, %v321
    %v370 = vpack.c.bf16 %v326, %v322
    %v371 = vpack.c.bf16 %v331, %v327
    %v372 = vpack.c.bf16 %v332, %v328
    %v373 = vpack.c.bf16 %v333, %v329
    %v374 = vpack.c.bf16 %v334, %v330
    %v375 = vpack.c.bf16 %v339, %v335
    %v376 = vpack.c.bf16 %v340, %v336
    %v377 = vpack.c.bf16 %v341, %v337
    %v378 = vpack.c.bf16 %v342, %v338
    %v379 = vpack.c.bf16 %v347, %v343
    %v380 = vpack.c.bf16 %v348, %v344
    %v381 = vpack.c.bf16 %v349, %v345
    %v382 = vpack.c.bf16 %v350, %v346
    %v383 = vlaneseq
    %v384 = vshrl.u32 %v383, 7
    %v385 = vsub.s32 0, %v384
    %v386 = vrot.slane %v125, %v385
    %v387 = vlaneseq
    %v388 = vshrl.u32 %v387, 7
    %v389 = vsub.s32 1, %v388
    %v390 = vrot.slane %v125, %v389
    %v391 = vlaneseq
    %v392 = vshrl.u32 %v391, 7
    %v393 = vsub.s32 2, %v392
    %v394 = vrot.slane %v125, %v393
    %v395 = vlaneseq
    %v396 = vshrl.u32 %v395, 7
    %v397 = vsub.s32 3, %v396
    %v398 = vrot.slane %v125, %v397
    %vm399 = vcmp.eq.s32.totalorder %v386, %v127
    %vm400 = vcmp.eq.s32.totalorder %v390, %v127
    %vm401 = vcmp.eq.s32.totalorder %v394, %v127
    %vm402 = vcmp.eq.s32.totalorder %v398, %v127
    %vm403 = vcmp.eq.s32.totalorder %v386, %v128
    %vm404 = vcmp.eq.s32.totalorder %v390, %v128
    %vm405 = vcmp.eq.s32.totalorder %v394, %v128
    %vm406 = vcmp.eq.s32.totalorder %v398, %v128
    %vm407 = vcmp.eq.s32.totalorder %v386, %v129
    %vm408 = vcmp.eq.s32.totalorder %v390, %v129
    %vm409 = vcmp.eq.s32.totalorder %v394, %v129
    %vm410 = vcmp.eq.s32.totalorder %v398, %v129
    %vm411 = vcmp.eq.s32.totalorder %v386, %v130
    %vm412 = vcmp.eq.s32.totalorder %v390, %v130
    %vm413 = vcmp.eq.s32.totalorder %v394, %v130
    %vm414 = vcmp.eq.s32.totalorder %v398, %v130
    %vm415 = vcmp.eq.s32.totalorder %v386, %v131
    %vm416 = vcmp.eq.s32.totalorder %v390, %v131
    %vm417 = vcmp.eq.s32.totalorder %v394, %v131
    %vm418 = vcmp.eq.s32.totalorder %v398, %v131
    %vm419 = vcmp.eq.s32.totalorder %v386, %v132
    %vm420 = vcmp.eq.s32.totalorder %v390, %v132
    %vm421 = vcmp.eq.s32.totalorder %v394, %v132
    %vm422 = vcmp.eq.s32.totalorder %v398, %v132
    %vm423 = vcmp.eq.s32.totalorder %v386, %v133
    %vm424 = vcmp.eq.s32.totalorder %v390, %v133
    %vm425 = vcmp.eq.s32.totalorder %v394, %v133
    %vm426 = vcmp.eq.s32.totalorder %v398, %v133
    %vm427 = vcmp.eq.s32.totalorder %v386, %v134
    %vm428 = vcmp.eq.s32.totalorder %v390, %v134
    %vm429 = vcmp.eq.s32.totalorder %v394, %v134
    %vm430 = vcmp.eq.s32.totalorder %v398, %v134
    %vm431 = vcmp.eq.s32.totalorder %v386, %v135
    %vm432 = vcmp.eq.s32.totalorder %v390, %v135
    %vm433 = vcmp.eq.s32.totalorder %v394, %v135
    %vm434 = vcmp.eq.s32.totalorder %v398, %v135
    %vm435 = vcmp.eq.s32.totalorder %v386, %v136
    %vm436 = vcmp.eq.s32.totalorder %v390, %v136
    %vm437 = vcmp.eq.s32.totalorder %v394, %v136
    %vm438 = vcmp.eq.s32.totalorder %v398, %v136
    %vm439 = vcmp.eq.s32.totalorder %v386, %v137
    %vm440 = vcmp.eq.s32.totalorder %v390, %v137
    %vm441 = vcmp.eq.s32.totalorder %v394, %v137
    %vm442 = vcmp.eq.s32.totalorder %v398, %v137
    %vm443 = vcmp.eq.s32.totalorder %v386, %v138
    %vm444 = vcmp.eq.s32.totalorder %v390, %v138
    %vm445 = vcmp.eq.s32.totalorder %v394, %v138
    %vm446 = vcmp.eq.s32.totalorder %v398, %v138
    %vm447 = vcmp.eq.s32.totalorder %v386, %v139
    %vm448 = vcmp.eq.s32.totalorder %v390, %v139
    %vm449 = vcmp.eq.s32.totalorder %v394, %v139
    %vm450 = vcmp.eq.s32.totalorder %v398, %v139
    %vm451 = vcmp.eq.s32.totalorder %v386, %v140
    %vm452 = vcmp.eq.s32.totalorder %v390, %v140
    %vm453 = vcmp.eq.s32.totalorder %v394, %v140
    %vm454 = vcmp.eq.s32.totalorder %v398, %v140
    %vm455 = vcmp.eq.s32.totalorder %v386, %v141
    %vm456 = vcmp.eq.s32.totalorder %v390, %v141
    %vm457 = vcmp.eq.s32.totalorder %v394, %v141
    %vm458 = vcmp.eq.s32.totalorder %v398, %v141
    %vm459 = vcmp.eq.s32.totalorder %v386, %v142
    %vm460 = vcmp.eq.s32.totalorder %v390, %v142
    %vm461 = vcmp.eq.s32.totalorder %v394, %v142
    %vm462 = vcmp.eq.s32.totalorder %v398, %v142
    %v463 = vsel %vm399, 1, 0
    %v464 = vsel %vm400, 1, 0
    %v465 = vsel %vm401, 1, 0
    %v466 = vsel %vm402, 1, 0
    %v467 = vsel %vm403, 1, 0
    %v468 = vsel %vm404, 1, 0
    %v469 = vsel %vm405, 1, 0
    %v470 = vsel %vm406, 1, 0
    %v471 = vsel %vm407, 1, 0
    %v472 = vsel %vm408, 1, 0
    %v473 = vsel %vm409, 1, 0
    %v474 = vsel %vm410, 1, 0
    %v475 = vsel %vm411, 1, 0
    %v476 = vsel %vm412, 1, 0
    %v477 = vsel %vm413, 1, 0
    %v478 = vsel %vm414, 1, 0
    %v479 = vsel %vm415, 1, 0
    %v480 = vsel %vm416, 1, 0
    %v481 = vsel %vm417, 1, 0
    %v482 = vsel %vm418, 1, 0
    %v483 = vsel %vm419, 1, 0
    %v484 = vsel %vm420, 1, 0
    %v485 = vsel %vm421, 1, 0
    %v486 = vsel %vm422, 1, 0
    %v487 = vsel %vm423, 1, 0
    %v488 = vsel %vm424, 1, 0
    %v489 = vsel %vm425, 1, 0
    %v490 = vsel %vm426, 1, 0
    %v491 = vsel %vm427, 1, 0
    %v492 = vsel %vm428, 1, 0
    %v493 = vsel %vm429, 1, 0
    %v494 = vsel %vm430, 1, 0
    %v495 = vsel %vm431, 1, 0
    %v496 = vsel %vm432, 1, 0
    %v497 = vsel %vm433, 1, 0
    %v498 = vsel %vm434, 1, 0
    %v499 = vsel %vm435, 1, 0
    %v500 = vsel %vm436, 1, 0
    %v501 = vsel %vm437, 1, 0
    %v502 = vsel %vm438, 1, 0
    %v503 = vsel %vm439, 1, 0
    %v504 = vsel %vm440, 1, 0
    %v505 = vsel %vm441, 1, 0
    %v506 = vsel %vm442, 1, 0
    %v507 = vsel %vm443, 1, 0
    %v508 = vsel %vm444, 1, 0
    %v509 = vsel %vm445, 1, 0
    %v510 = vsel %vm446, 1, 0
    %v511 = vsel %vm447, 1, 0
    %v512 = vsel %vm448, 1, 0
    %v513 = vsel %vm449, 1, 0
    %v514 = vsel %vm450, 1, 0
    %v515 = vsel %vm451, 1, 0
    %v516 = vsel %vm452, 1, 0
    %v517 = vsel %vm453, 1, 0
    %v518 = vsel %vm454, 1, 0
    %v519 = vsel %vm455, 1, 0
    %v520 = vsel %vm456, 1, 0
    %v521 = vsel %vm457, 1, 0
    %v522 = vsel %vm458, 1, 0
    %v523 = vsel %vm459, 1, 0
    %v524 = vsel %vm460, 1, 0
    %v525 = vsel %vm461, 1, 0
    %v526 = vsel %vm462, 1, 0
    %v527 = vcvt.s32.f32 %v463
    %v528 = vcvt.s32.f32 %v464
    %v529 = vcvt.s32.f32 %v465
    %v530 = vcvt.s32.f32 %v466
    %v531 = vcvt.s32.f32 %v467
    %v532 = vcvt.s32.f32 %v468
    %v533 = vcvt.s32.f32 %v469
    %v534 = vcvt.s32.f32 %v470
    %v535 = vcvt.s32.f32 %v471
    %v536 = vcvt.s32.f32 %v472
    %v537 = vcvt.s32.f32 %v473
    %v538 = vcvt.s32.f32 %v474
    %v539 = vcvt.s32.f32 %v475
    %v540 = vcvt.s32.f32 %v476
    %v541 = vcvt.s32.f32 %v477
    %v542 = vcvt.s32.f32 %v478
    %v543 = vcvt.s32.f32 %v479
    %v544 = vcvt.s32.f32 %v480
    %v545 = vcvt.s32.f32 %v481
    %v546 = vcvt.s32.f32 %v482
    %v547 = vcvt.s32.f32 %v483
    %v548 = vcvt.s32.f32 %v484
    %v549 = vcvt.s32.f32 %v485
    %v550 = vcvt.s32.f32 %v486
    %v551 = vcvt.s32.f32 %v487
    %v552 = vcvt.s32.f32 %v488
    %v553 = vcvt.s32.f32 %v489
    %v554 = vcvt.s32.f32 %v490
    %v555 = vcvt.s32.f32 %v491
    %v556 = vcvt.s32.f32 %v492
    %v557 = vcvt.s32.f32 %v493
    %v558 = vcvt.s32.f32 %v494
    %v559 = vcvt.s32.f32 %v495
    %v560 = vcvt.s32.f32 %v496
    %v561 = vcvt.s32.f32 %v497
    %v562 = vcvt.s32.f32 %v498
    %v563 = vcvt.s32.f32 %v499
    %v564 = vcvt.s32.f32 %v500
    %v565 = vcvt.s32.f32 %v501
    %v566 = vcvt.s32.f32 %v502
    %v567 = vcvt.s32.f32 %v503
    %v568 = vcvt.s32.f32 %v504
    %v569 = vcvt.s32.f32 %v505
    %v570 = vcvt.s32.f32 %v506
    %v571 = vcvt.s32.f32 %v507
    %v572 = vcvt.s32.f32 %v508
    %v573 = vcvt.s32.f32 %v509
    %v574 = vcvt.s32.f32 %v510
    %v575 = vcvt.s32.f32 %v511
    %v576 = vcvt.s32.f32 %v512
    %v577 = vcvt.s32.f32 %v513
    %v578 = vcvt.s32.f32 %v514
    %v579 = vcvt.s32.f32 %v515
    %v580 = vcvt.s32.f32 %v516
    %v581 = vcvt.s32.f32 %v517
    %v582 = vcvt.s32.f32 %v518
    %v583 = vcvt.s32.f32 %v519
    %v584 = vcvt.s32.f32 %v520
    %v585 = vcvt.s32.f32 %v521
    %v586 = vcvt.s32.f32 %v522
    %v587 = vcvt.s32.f32 %v523
    %v588 = vcvt.s32.f32 %v524
    %v589 = vcvt.s32.f32 %v525
    %v590 = vcvt.s32.f32 %v526
    %v591 = vpack.c.bf16 %v531, %v527
    %v592 = vpack.c.bf16 %v532, %v528
    %v593 = vpack.c.bf16 %v533, %v529
    %v594 = vpack.c.bf16 %v534, %v530
    %v595 = vpack.c.bf16 %v539, %v535
    %v596 = vpack.c.bf16 %v540, %v536
    %v597 = vpack.c.bf16 %v541, %v537
    %v598 = vpack.c.bf16 %v542, %v538
    %v599 = vpack.c.bf16 %v547, %v543
    %v600 = vpack.c.bf16 %v548, %v544
    %v601 = vpack.c.bf16 %v549, %v545
    %v602 = vpack.c.bf16 %v550, %v546
    %v603 = vpack.c.bf16 %v555, %v551
    %v604 = vpack.c.bf16 %v556, %v552
    %v605 = vpack.c.bf16 %v557, %v553
    %v606 = vpack.c.bf16 %v558, %v554
    %v607 = vpack.c.bf16 %v563, %v559
    %v608 = vpack.c.bf16 %v564, %v560
    %v609 = vpack.c.bf16 %v565, %v561
    %v610 = vpack.c.bf16 %v566, %v562
    %v611 = vpack.c.bf16 %v571, %v567
    %v612 = vpack.c.bf16 %v572, %v568
    %v613 = vpack.c.bf16 %v573, %v569
    %v614 = vpack.c.bf16 %v574, %v570
    %v615 = vpack.c.bf16 %v579, %v575
    %v616 = vpack.c.bf16 %v580, %v576
    %v617 = vpack.c.bf16 %v581, %v577
    %v618 = vpack.c.bf16 %v582, %v578
    %v619 = vpack.c.bf16 %v587, %v583
    %v620 = vpack.c.bf16 %v588, %v584
    %v621 = vpack.c.bf16 %v589, %v585
    %v622 = vpack.c.bf16 %v590, %v586
    %v623 = vld [vmem:[#allocation7] sm:$0xff]
    %v624 = vld [vmem:[#allocation7 + $0x8] sm:$0xff]
    %v625 = vld [vmem:[#allocation7 + $0x10] sm:$0xff]
    %v626 = vld [vmem:[#allocation7 + $0x18] sm:$0xff]
    %v627 = vld [vmem:[#allocation7 + $0x20] sm:$0xff]
    %v628 = vld [vmem:[#allocation7 + $0x28] sm:$0xff]
    %v629 = vld [vmem:[#allocation7 + $0x30] sm:$0xff]
    %v630 = vld [vmem:[#allocation7 + $0x38] sm:$0xff]
    %v631 = vld [vmem:[#allocation7 + $0x40] sm:$0xff]
    %v632 = vld [vmem:[#allocation7 + $0x48] sm:$0xff]
    %v633 = vld [vmem:[#allocation7 + $0x50] sm:$0xff]
    %v634 = vld [vmem:[#allocation7 + $0x58] sm:$0xff]
    %v635 = vld [vmem:[#allocation7 + $0x60] sm:$0xff]
    %v636 = vld [vmem:[#allocation7 + $0x68] sm:$0xff]
    %v637 = vld [vmem:[#allocation7 + $0x70] sm:$0xff]
    %v638 = vld [vmem:[#allocation7 + $0x78] sm:$0xff]
    %639 = vmatprep.subr.bf16.mxu0 %v592
    %640 = vmatpush1.bf16.xpose.msra.mxu0 %v591
    %641 = vmatprep.subr.bf16.mxu0 %v596
    %642 = vmatpush1.bf16.xpose.msra.mxu0 %v595
    %643 = vmatprep.subr.bf16.mxu0 %v600
    %644 = vmatpush1.bf16.xpose.msra.mxu0 %v599
    %645 = vmatprep.subr.bf16.mxu0 %v604
    %646 = vmatpush1.bf16.xpose.msra.mxu0 %v603
    %647 = vmatprep.subr.bf16.mxu0 %v608
    %648 = vmatpush1.bf16.xpose.msra.mxu0 %v607
    %649 = vmatprep.subr.bf16.mxu0 %v612
    %650 = vmatpush1.bf16.xpose.msra.mxu0 %v611
    %651 = vmatprep.subr.bf16.mxu0 %v616
    %652 = vmatpush1.bf16.xpose.msra.mxu0 %v615
    %653 = vmatprep.subr.bf16.mxu0 %v620
    %654 = vmatpush1.bf16.xpose.msra.mxu0 %v619
    %655 = vmatprep.subr.bf16.mxu0 0
    %656 = vmatpush1.bf16.xpose.msra.mxu0 0
    %657 = vmatprep.subr.bf16.mxu0 0
    %658 = vmatpush1.bf16.xpose.msra.mxu0 0
    %659 = vmatprep.subr.bf16.mxu0 0
    %660 = vmatpush1.bf16.xpose.msra.mxu0 0
    %661 = vmatprep.subr.bf16.mxu0 0
    %662 = vmatpush1.bf16.xpose.msra.mxu0 0
    %663 = vmatprep.subr.bf16.mxu0 0
    %664 = vmatpush1.bf16.xpose.msra.mxu0 0
    %665 = vmatprep.subr.bf16.mxu0 0
    %666 = vmatpush1.bf16.xpose.msra.mxu0 0
    %667 = vmatprep.subr.bf16.mxu0 0
    %668 = vmatpush1.bf16.xpose.msra.mxu0 0
    %669 = vmatprep.subr.bf16.mxu0 0
    %670 = vmatpush1.bf16.xpose.msra.mxu0 0
    %671 = vmatprep.mubr.bf16.mxu0 %v352
    %672 = vmatmul.mubr.bf16.gmra.mrb[0].mxu0 %v351
    %v673 = vpop.f32.mrb[0].mxu0
    %v674 = vadd.f32 0.0, %v673
    %v675 = vpop.f32.mrb[0].mxu0
    %v676 = vpop.f32.mrb[0].mxu0
    %v677 = vadd.f32 0.0, %v676
    %v678 = vpop.f32.mrb[0].mxu0
    %679 = vmatprep.mubr.bf16.mxu0 %v356
    %680 = vmatmul.mubr.bf16.gmra.mrb[0].mxu0 %v355
    %v681 = vpop.f32.mrb[0].mxu0
    %v682 = vadd.f32 0.0, %v681
    %v683 = vpop.f32.mrb[0].mxu0
    %v684 = vpop.f32.mrb[0].mxu0
    %v685 = vadd.f32 0.0, %v684
    %v686 = vpop.f32.mrb[0].mxu0
    %687 = vmatprep.mubr.bf16.mxu0 %v360
    %688 = vmatmul.mubr.bf16.gmra.mrb[0].mxu0 %v359
    %v689 = vpop.f32.mrb[0].mxu0
    %v690 = vadd.f32 0.0, %v689
    %v691 = vpop.f32.mrb[0].mxu0
    %v692 = vpop.f32.mrb[0].mxu0
    %v693 = vadd.f32 0.0, %v692
    %v694 = vpop.f32.mrb[0].mxu0
    %695 = vmatprep.mubr.bf16.mxu0 %v364
    %696 = vmatmul.mubr.bf16.gmra.mrb[0].mxu0 %v363
    %v697 = vpop.f32.mrb[0].mxu0
    %v698 = vadd.f32 0.0, %v697
    %v699 = vpop.f32.mrb[0].mxu0
    %v700 = vpop.f32.mrb[0].mxu0
    %v701 = vadd.f32 0.0, %v700
    %v702 = vpop.f32.mrb[0].mxu0
    %703 = vmatprep.mubr.bf16.mxu0 %v368
    %704 = vmatmul.mubr.bf16.gmra.mrb[0].mxu0 %v367
    %v705 = vpop.f32.mrb[0].mxu0
    %v706 = vadd.f32 0.0, %v705
    %v707 = vpop.f32.mrb[0].mxu0
    %v708 = vpop.f32.mrb[0].mxu0
    %v709 = vadd.f32 0.0, %v708
    %v710 = vpop.f32.mrb[0].mxu0
    %711 = vmatprep.mubr.bf16.mxu0 %v372
    %712 = vmatmul.mubr.bf16.gmra.mrb[0].mxu0 %v371
    %v713 = vpop.f32.mrb[0].mxu0
    %v714 = vadd.f32 0.0, %v713
    %v715 = vpop.f32.mrb[0].mxu0
    %v716 = vpop.f32.mrb[0].mxu0
    %v717 = vadd.f32 0.0, %v716
    %v718 = vpop.f32.mrb[0].mxu0
    %719 = vmatprep.mubr.bf16.mxu0 %v376
    %720 = vmatmul.mubr.bf16.gmra.mrb[0].mxu0 %v375
    %v721 = vpop.f32.mrb[0].mxu0
    %v722 = vadd.f32 0.0, %v721
    %v723 = vpop.f32.mrb[0].mxu0
    %v724 = vpop.f32.mrb[0].mxu0
    %v725 = vadd.f32 0.0, %v724
    %v726 = vpop.f32.mrb[0].mxu0
    %727 = vmatprep.mubr.bf16.mxu0 %v380
    %728 = vmatmul.mubr.bf16.gmra.mrb[0].mxu0 %v379
    %v729 = vpop.f32.mrb[0].mxu0
    %v730 = vadd.f32 0.0, %v729
    %v731 = vpop.f32.mrb[0].mxu0
    %v732 = vpop.f32.mrb[0].mxu0
    %v733 = vadd.f32 0.0, %v732
    %v734 = vpop.f32.mrb[0].mxu0
    %735 = vdwg.mxu0
    %736 = vmatprep.subr.bf16.mxu0 %v594
    %737 = vmatpush1.bf16.xpose.msra.mxu0 %v593
    %738 = vmatprep.subr.bf16.mxu0 %v598
    %739 = vmatpush1.bf16.xpose.msra.mxu0 %v597
    %740 = vmatprep.subr.bf16.mxu0 %v602
    %741 = vmatpush1.bf16.xpose.msra.mxu0 %v601
    %742 = vmatprep.subr.bf16.mxu0 %v606
    %743 = vmatpush1.bf16.xpose.msra.mxu0 %v605
    %744 = vmatprep.subr.bf16.mxu0 %v610
    %745 = vmatpush1.bf16.xpose.msra.mxu0 %v609
    %746 = vmatprep.subr.bf16.mxu0 %v614
    %747 = vmatpush1.bf16.xpose.msra.mxu0 %v613
    %748 = vmatprep.subr.bf16.mxu0 %v618
    %749 = vmatpush1.bf16.xpose.msra.mxu0 %v617
    %750 = vmatprep.subr.bf16.mxu0 %v622
    %751 = vmatpush1.bf16.xpose.msra.mxu0 %v621
    %752 = vmatprep.subr.bf16.mxu0 0
    %753 = vmatpush1.bf16.xpose.msra.mxu0 0
    %754 = vmatprep.subr.bf16.mxu0 0
    %755 = vmatpush1.bf16.xpose.msra.mxu0 0
    %756 = vmatprep.subr.bf16.mxu0 0
    %757 = vmatpush1.bf16.xpose.msra.mxu0 0
    %758 = vmatprep.subr.bf16.mxu0 0
    %759 = vmatpush1.bf16.xpose.msra.mxu0 0
    %760 = vmatprep.subr.bf16.mxu0 0
    %761 = vmatpush1.bf16.xpose.msra.mxu0 0
    %762 = vmatprep.subr.bf16.mxu0 0
    %763 = vmatpush1.bf16.xpose.msra.mxu0 0
    %764 = vmatprep.subr.bf16.mxu0 0
    %765 = vmatpush1.bf16.xpose.msra.mxu0 0
    %766 = vmatprep.subr.bf16.mxu0 0
    %767 = vmatpush1.bf16.xpose.msra.mxu0 0
    %768 = vmatprep.mubr.bf16.mxu0 %v354
    %769 = vmatmul.mubr.bf16.gmra.mrb[0].mxu0 %v353
    %v770 = vpop.f32.mrb[0].mxu0
    %v771 = vadd.f32 %v674, %v770
    %v772 = vpop.f32.mrb[0].mxu0
    %v773 = vpop.f32.mrb[0].mxu0
    %v774 = vadd.f32 %v677, %v773
    %v775 = vpop.f32.mrb[0].mxu0
    %776 = vmatprep.mubr.bf16.mxu0 %v358
    %777 = vmatmul.mubr.bf16.gmra.mrb[0].mxu0 %v357
    %v778 = vpop.f32.mrb[0].mxu0
    %v779 = vadd.f32 %v682, %v778
    %v780 = vpop.f32.mrb[0].mxu0
    %v781 = vpop.f32.mrb[0].mxu0
    %v782 = vadd.f32 %v685, %v781
    %v783 = vpop.f32.mrb[0].mxu0
    %784 = vmatprep.mubr.bf16.mxu0 %v362
    %785 = vmatmul.mubr.bf16.gmra.mrb[0].mxu0 %v361
    %v786 = vpop.f32.mrb[0].mxu0
    %v787 = vadd.f32 %v690, %v786
    %v788 = vpop.f32.mrb[0].mxu0
    %v789 = vpop.f32.mrb[0].mxu0
    %v790 = vadd.f32 %v693, %v789
    %v791 = vpop.f32.mrb[0].mxu0
    %792 = vmatprep.mubr.bf16.mxu0 %v366
    %793 = vmatmul.mubr.bf16.gmra.mrb[0].mxu0 %v365
    %v794 = vpop.f32.mrb[0].mxu0
    %v795 = vadd.f32 %v698, %v794
    %v796 = vpop.f32.mrb[0].mxu0
    %v797 = vpop.f32.mrb[0].mxu0
    %v798 = vadd.f32 %v701, %v797
    %v799 = vpop.f32.mrb[0].mxu0
    %800 = vmatprep.mubr.bf16.mxu0 %v370
    %801 = vmatmul.mubr.bf16.gmra.mrb[0].mxu0 %v369
    %v802 = vpop.f32.mrb[0].mxu0
    %v803 = vadd.f32 %v706, %v802
    %v804 = vpop.f32.mrb[0].mxu0
    %v805 = vpop.f32.mrb[0].mxu0
    %v806 = vadd.f32 %v709, %v805
    %v807 = vpop.f32.mrb[0].mxu0
    %808 = vmatprep.mubr.bf16.mxu0 %v374
    %809 = vmatmul.mubr.bf16.gmra.mrb[0].mxu0 %v373
    %v810 = vpop.f32.mrb[0].mxu0
    %v811 = vadd.f32 %v714, %v810
    %v812 = vpop.f32.mrb[0].mxu0
    %v813 = vpop.f32.mrb[0].mxu0
    %v814 = vadd.f32 %v717, %v813
    %v815 = vpop.f32.mrb[0].mxu0
    %816 = vmatprep.mubr.bf16.mxu0 %v378
    %817 = vmatmul.mubr.bf16.gmra.mrb[0].mxu0 %v377
    %v818 = vpop.f32.mrb[0].mxu0
    %v819 = vadd.f32 %v722, %v818
    %v820 = vpop.f32.mrb[0].mxu0
    %v821 = vpop.f32.mrb[0].mxu0
    %v822 = vadd.f32 %v725, %v821
    %v823 = vpop.f32.mrb[0].mxu0
    %824 = vmatprep.mubr.bf16.mxu0 %v382
    %825 = vmatmul.mubr.bf16.gmra.mrb[0].mxu0 %v381
    %v826 = vpop.f32.mrb[0].mxu0
    %v827 = vadd.f32 %v730, %v826
    %v828 = vpop.f32.mrb[0].mxu0
    %v829 = vpop.f32.mrb[0].mxu0
    %v830 = vadd.f32 %v733, %v829
    %v831 = vpop.f32.mrb[0].mxu0
    %832 = vdwg.mxu0
    %v833 = vadd.f32 %v623, %v771
    %v834 = vadd.f32 %v624, %v774
    %v835 = vadd.f32 %v625, %v779
    %v836 = vadd.f32 %v626, %v782
    %v837 = vadd.f32 %v627, %v787
    %v838 = vadd.f32 %v628, %v790
    %v839 = vadd.f32 %v629, %v795
    %v840 = vadd.f32 %v630, %v798
    %v841 = vadd.f32 %v631, %v803
    %v842 = vadd.f32 %v632, %v806
    %v843 = vadd.f32 %v633, %v811
    %v844 = vadd.f32 %v634, %v814
    %v845 = vadd.f32 %v635, %v819
    %v846 = vadd.f32 %v636, %v822
    %v847 = vadd.f32 %v637, %v827
    %v848 = vadd.f32 %v638, %v830
    %849 = vst [vmem:[#allocation7] sm:$0xff] %v833
    %850 = vst [vmem:[#allocation7 + $0x8] sm:$0xff] %v834
    %851 = vst [vmem:[#allocation7 + $0x10] sm:$0xff] %v835
    %852 = vst [vmem:[#allocation7 + $0x18] sm:$0xff] %v836
    %853 = vst [vmem:[#allocation7 + $0x20] sm:$0xff] %v837
    %854 = vst [vmem:[#allocation7 + $0x28] sm:$0xff] %v838
    %855 = vst [vmem:[#allocation7 + $0x30] sm:$0xff] %v839
    %856 = vst [vmem:[#allocation7 + $0x38] sm:$0xff] %v840
    %857 = vst [vmem:[#allocation7 + $0x40] sm:$0xff] %v841
    %858 = vst [vmem:[#allocation7 + $0x48] sm:$0xff] %v842
    %859 = vst [vmem:[#allocation7 + $0x50] sm:$0xff] %v843
    %860 = vst [vmem:[#allocation7 + $0x58] sm:$0xff] %v844
    %861 = vst [vmem:[#allocation7 + $0x60] sm:$0xff] %v845
    %862 = vst [vmem:[#allocation7 + $0x68] sm:$0xff] %v846
    %863 = vst [vmem:[#allocation7 + $0x70] sm:$0xff] %v847
    %864 = vst [vmem:[#allocation7 + $0x78] sm:$0xff] %v848
    // Predicated region
    $region18: #{tpu_custom_call.1} parent=1 // pred_check
      _
    $region19: #{tpu_custom_call.1} parent=1 // pred_check_branch
      %866 = sbr.rel (0) target = $region21
    $region20: #{tpu_custom_call.1} parent=1 // pred_region
      %s868 = ssub.s32 2048, 2048
      %869 = vsyncadd [#allocation6], %s868
      %s870 = sshll.u32 [#allocation7], 4
      %s871 = int_to_ptr.vmem [resolvable:$true] %s870
      %876 = dma.vmem_to_hbm [thread:$0]  %s871, 2048, %s3, [#allocation6], 128, 128, 8
    $region21: #{tpu_custom_call.1} parent=1 // pred_fallthru
      _
    // Predicated region
    $region22: #{tpu_custom_call.1} parent=1 // pred_check
      _
    $region23: #{tpu_custom_call.1} parent=1 // pred_check_branch
      %878 = sbr.rel (0) target = $region25
    $region24: #{tpu_custom_call.1} parent=1 // pred_region
      %879 = dma.done [#allocation6], 2048
    $region25: #{tpu_custom_call.1} parent=1 // pred_fallthru
      _
    %880 = vsyncpa [#allocation5], 1
    %881 = vsyncpa [#allocation6], 1

// kernel: tpu_custom_call.1
$region0: #{tpu_custom_call.1}
  #allocation0 [shape = 'u32[]', space=smem, size = 0x4, offset = 0x4, fixed_abs, tag = 'smem constant byte address 0x4 - core index']
  #allocation1 [shape = 'u32[144,128]{1,0:T(1,128)}', space=vmem, size = 0x12000, scoped, tag = 'internal scratch']
  #allocation2 [shape = 's32[1]{0}', space=sflag, size = 0x4, scoped, tag = 'scoped memory for tpu_custom_call.1']
  #allocation3 [shape = 's32[1]{0:T(128)S(6)}', space=smem, size = 0x200, scoped, tag = 'prefetched SMEM operand 0']
  %s0 = inlined_call_operand.<no memory space> [shape: s32[1], index: 0, kind: input, shape index: {}]
  %s1 = inlined_call_operand.hbm [shape: s32[1,512], index: 1, kind: input, shape index: {}]
  %s2 = inlined_call_operand.vmem [shape: s32[1,512], index: 2, kind: input, shape index: {}]
  %s3 = inlined_call_operand.hbm [shape: f32[1,128,128], index: 3, kind: output, shape index: {}]
  %s4 = sld [smem:[#allocation0]]
  $region26: #{tpu_custom_call.1} parent=0
    _
  %s6 = ssub.s32 1, %s4
  %s7 = scalar_select 0, %s6, %s4
  %8 = sst [smem:[#allocation3]] %s0
  $region1: #{tpu_custom_call.1} parent=0
    #allocation4 [shape = 'u8[2048]{0}', space=vmem, size = 0x800, scoped, tag = 'input window, operand 1, single buffered']
    #allocation5 [shape = 's32[1]{0}', space=sflag, size = 0x4, scoped, tag = 'scoped memory for tpu_custom_call.1']
    #allocation6 [shape = 's32[1]{0}', space=sflag, size = 0x4, scoped, tag = 'scoped memory for tpu_custom_call.1']
    #allocation7 [shape = 'u8[65536]{0}', space=vmem, size = 0x10000, scoped, tag = 'output window, operand 0, single buffered']
    %9 = vsyncpa [#allocation5], 0
    %10 = vsyncpa [#allocation6], 0
    // Predicated region
    $region2: #{tpu_custom_call.1} parent=1 // pred_check
      _
    $region3: #{tpu_custom_call.1} parent=1 // pred_check_branch
      %12 = sbr.rel (0) target = $region5
    $region4: #{tpu_custom_call.1} parent=1 // pred_region
      %s13 = sadd.s32 0, 0
      %p14 = scmp.lt.s32.totalorder %s13, 0
      %s15 = scalar_select %p14, %s13, 0
      %s16 = smul.u32 4, %s15
      %s18 = ssub.s32 64, 64
      %19 = vsyncadd [#allocation5], %s18
      %s20 = smul.addr %s16, 16
      %s21 = scalar_lea.hbm %s1, %s20
      %s23 = sshll.u32 [#allocation4], 4
      %s24 = int_to_ptr.vmem [resolvable:$true] %s23
      %26 = dma.hbm_to_vmem [thread:$0]  %s21, 64, %s24, [#allocation5]
    $region5: #{tpu_custom_call.1} parent=1 // pred_fallthru
      _
    // Predicated region
    $region6: #{tpu_custom_call.1} parent=1 // pred_check
      _
    $region7: #{tpu_custom_call.1} parent=1 // pred_check_branch
      %28 = sbr.rel (0) target = $region9
    $region8: #{tpu_custom_call.1} parent=1 // pred_region
      %s29 = sadd.s32 0, 0
      %p30 = scmp.lt.s32.totalorder %s29, 0
      %s31 = scalar_select %p30, %s29, 0
      %s32 = smul.u32 4, %s31
      %p33 = scmp.lt.s32.totalorder %s32, 3
      %s34 = scalar_select %p33, %s32, 3
      %s35 = scalar_lea.vmem %s2, %s34
      %s36 = sadd.s32 0, 0
      %p37 = scmp.lt.s32.totalorder %s36, 0
      %s38 = scalar_select %p37, %s36, 0
      %s39 = smul.u32 4, %s38
    $region9: #{tpu_custom_call.1} parent=1 // pred_fallthru
      _
    // Predicated region
    $region10: #{tpu_custom_call.1} parent=1 // pred_check
      _
    $region11: #{tpu_custom_call.1} parent=1 // pred_check_branch
      %41 = sbr.rel (0) target = $region13
    $region12: #{tpu_custom_call.1} parent=1 // pred_region
      %42 = dma.done [#allocation5], 64
    $region13: #{tpu_custom_call.1} parent=1 // pred_fallthru
      _
    %s43 = sadd.s32 0, 0
    %p44 = scmp.lt.s32.totalorder %s43, 0
    %s45 = scalar_select %p44, %s43, 0
    %s46 = smul.u32 4, %s45
    %p47 = scmp.lt.s32.totalorder %s46, 3
    %s48 = scalar_select %p47, %s46, 3
    %s49 = scalar_lea.vmem %s2, %s48
    %s50 = sadd.s32 0, 0
    %p51 = scmp.lt.s32.totalorder %s50, 0
    %s52 = scalar_select %p51, %s50, 0
    %s53 = smul.u32 4, %s52
    %s54 = sadd.s32 0, 0
    %p55 = scmp.lt.s32.totalorder %s54, 0
    %s56 = scalar_select %p55, %s54, 0
    %s57 = smul.u32 4, %s56
    %p58 = scmp.lt.s32.totalorder %s57, 3
    %s59 = scalar_select %p58, %s57, 3
    %s60 = scalar_lea.vmem %s2, %s59
    %s61 = sadd.s32 0, 0
    %p62 = scmp.lt.s32.totalorder %s61, 0
    %s63 = scalar_select %p62, %s61, 0
    %s64 = smul.u32 4, %s63
    %p66 = scmp.eq.s32.totalorder 0, 0
    // Predicated region
    $region14: #{tpu_custom_call.1} parent=1 // pred_check
      %p67 = pneg %p66
    $region15: #{tpu_custom_call.1} parent=1 // pred_check_branch
      %69 = sbr.rel (%p67) target = $region17
    $region16: #{tpu_custom_call.1} parent=1 // pred_region
      %70 = vst [vmem:[#allocation7] sm:$0xff] 0.0
      %71 = vst [vmem:[#allocation7 + $0x8] sm:$0xff] 0.0
      %72 = vst [vmem:[#allocation7 + $0x10] sm:$0xff] 0.0
      %73 = vst [vmem:[#allocation7 + $0x18] sm:$0xff] 0.0
      %74 = vst [vmem:[#allocation7 + $0x20] sm:$0xff] 0.0
      %75 = vst [vmem:[#allocation7 + $0x28] sm:$0xff] 0.0
      %76 = vst [vmem:[#allocation7 + $0x30] sm:$0xff] 0.0
      %77 = vst [vmem:[#allocation7 + $0x38] sm:$0xff] 0.0
      %78 = vst [vmem:[#allocation7 + $0x40] sm:$0xff] 0.0
      %79 = vst [vmem:[#allocation7 + $0x48] sm:$0xff] 0.0
      %80 = vst [vmem:[#allocation7 + $0x50] sm:$0xff] 0.0
      %81 = vst [vmem:[#allocation7 + $0x58] sm:$0xff] 0.0
      %82 = vst [vmem:[#allocation7 + $0x60] sm:$0xff] 0.0
      %83 = vst [vmem:[#allocation7 + $0x68] sm:$0xff] 0.0
      %84 = vst [vmem:[#allocation7 + $0x70] sm:$0xff] 0.0
      %85 = vst [vmem:[#allocation7 + $0x78] sm:$0xff] 0.0
    $region17: #{tpu_custom_call.1} parent=1 // pred_fallthru
      _
    %s86 = sld [smem:[#allocation3]]
    %s87 = sadd.s32 0, 0
    %v88 = vlaneseq
    %v89 = vand.u32 %v88, 127
    %v90 = vadd.s32 %v89, 128
    %v91 = vadd.s32 %v89, 256
    %v92 = vadd.s32 %v89, 384
    %s93 = smul.u32 %s87, 512
    %v94 = vstv %s93
    %v95 = vadd.s32 %v89, %v94
    %v96 = vadd.s32 %v90, %v94
    %v97 = vadd.s32 %v91, %v94
    %v98 = vadd.s32 %v92, %v94
    %v99 = vstv %s86
    %vm100 = vcmp.lt.s32.totalorder %v95, %v99
    %vm101 = vcmp.lt.s32.totalorder %v96, %v99
    %vm102 = vcmp.lt.s32.totalorder %v97, %v99
    %vm103 = vcmp.lt.s32.totalorder %v98, %v99
    %v104 = vld [vmem:[#allocation4] sm:$0xf]
    %v105 = vlaneseq
    %v106 = vshrl.u32 %v105, 7
    %v107 = vsub.s32 0, %v106
    %v108 = vrot.slane %v104, %v107
    %v109 = vlaneseq
    %v110 = vshrl.u32 %v109, 7
    %v111 = vsub.s32 1, %v110
    %v112 = vrot.slane %v104, %v111
    %v113 = vlaneseq
    %v114 = vshrl.u32 %v113, 7
    %v115 = vsub.s32 2, %v114
    %v116 = vrot.slane %v104, %v115
    %v117 = vlaneseq
    %v118 = vshrl.u32 %v117, 7
    %v119 = vsub.s32 3, %v118
    %v120 = vrot.slane %v104, %v119
    %v121 = vsel %vm100, %v108, 4294967295
    %v122 = vsel %vm101, %v112, 4294967295
    %v123 = vsel %vm102, %v116, 4294967295
    %v124 = vsel %vm103, %v120, 4294967295
    %v125 = vld [vmem:[%s60] sm:$0xf]
    %v126 = vlaneseq
    %v127 = vshrl.u32 %v126, 7
    %v128 = vadd.s32 %v127, 8
    %v129 = vadd.s32 %v127, 16
    %v130 = vadd.s32 %v127, 24
    %v131 = vadd.s32 %v127, 32
    %v132 = vadd.s32 %v127, 40
    %v133 = vadd.s32 %v127, 48
    %v134 = vadd.s32 %v127, 56
    %v135 = vadd.s32 %v127, 64
    %v136 = vadd.s32 %v127, 72
    %v137 = vadd.s32 %v127, 80
    %v138 = vadd.s32 %v127, 88
    %v139 = vadd.s32 %v127, 96
    %v140 = vadd.s32 %v127, 104
    %v141 = vadd.s32 %v127, 112
    %v142 = vadd.s32 %v127, 120
    %v143 = vlaneseq
    %v144 = vshrl.u32 %v143, 7
    %v145 = vsub.s32 0, %v144
    %v146 = vrot.slane %v121, %v145
    %v147 = vlaneseq
    %v148 = vshrl.u32 %v147, 7
    %v149 = vsub.s32 0, %v148
    %v150 = vrot.slane %v122, %v149
    %v151 = vlaneseq
    %v152 = vshrl.u32 %v151, 7
    %v153 = vsub.s32 0, %v152
    %v154 = vrot.slane %v123, %v153
    %v155 = vlaneseq
    %v156 = vshrl.u32 %v155, 7
    %v157 = vsub.s32 0, %v156
    %v158 = vrot.slane %v124, %v157
    %vm159 = vcmp.eq.s32.totalorder %v146, %v127
    %vm160 = vcmp.eq.s32.totalorder %v150, %v127
    %vm161 = vcmp.eq.s32.totalorder %v154, %v127
    %vm162 = vcmp.eq.s32.totalorder %v158, %v127
    %vm163 = vcmp.eq.s32.totalorder %v146, %v128
    %vm164 = vcmp.eq.s32.totalorder %v150, %v128
    %vm165 = vcmp.eq.s32.totalorder %v154, %v128
    %vm166 = vcmp.eq.s32.totalorder %v158, %v128
    %vm167 = vcmp.eq.s32.totalorder %v146, %v129
    %vm168 = vcmp.eq.s32.totalorder %v150, %v129
    %vm169 = vcmp.eq.s32.totalorder %v154, %v129
    %vm170 = vcmp.eq.s32.totalorder %v158, %v129
    %vm171 = vcmp.eq.s32.totalorder %v146, %v130
    %vm172 = vcmp.eq.s32.totalorder %v150, %v130
    %vm173 = vcmp.eq.s32.totalorder %v154, %v130
    %vm174 = vcmp.eq.s32.totalorder %v158, %v130
    %vm175 = vcmp.eq.s32.totalorder %v146, %v131
    %vm176 = vcmp.eq.s32.totalorder %v150, %v131
    %vm177 = vcmp.eq.s32.totalorder %v154, %v131
    %vm178 = vcmp.eq.s32.totalorder %v158, %v131
    %vm179 = vcmp.eq.s32.totalorder %v146, %v132
    %vm180 = vcmp.eq.s32.totalorder %v150, %v132
    %vm181 = vcmp.eq.s32.totalorder %v154, %v132
    %vm182 = vcmp.eq.s32.totalorder %v158, %v132
    %vm183 = vcmp.eq.s32.totalorder %v146, %v133
    %vm184 = vcmp.eq.s32.totalorder %v150, %v133
    %vm185 = vcmp.eq.s32.totalorder %v154, %v133
    %vm186 = vcmp.eq.s32.totalorder %v158, %v133
    %vm187 = vcmp.eq.s32.totalorder %v146, %v134
    %vm188 = vcmp.eq.s32.totalorder %v150, %v134
    %vm189 = vcmp.eq.s32.totalorder %v154, %v134
    %vm190 = vcmp.eq.s32.totalorder %v158, %v134
    %vm191 = vcmp.eq.s32.totalorder %v146, %v135
    %vm192 = vcmp.eq.s32.totalorder %v150, %v135
    %vm193 = vcmp.eq.s32.totalorder %v154, %v135
    %vm194 = vcmp.eq.s32.totalorder %v158, %v135
    %vm195 = vcmp.eq.s32.totalorder %v146, %v136
    %vm196 = vcmp.eq.s32.totalorder %v150, %v136
    %vm197 = vcmp.eq.s32.totalorder %v154, %v136
    %vm198 = vcmp.eq.s32.totalorder %v158, %v136
    %vm199 = vcmp.eq.s32.totalorder %v146, %v137
    %vm200 = vcmp.eq.s32.totalorder %v150, %v137
    %vm201 = vcmp.eq.s32.totalorder %v154, %v137
    %vm202 = vcmp.eq.s32.totalorder %v158, %v137
    %vm203 = vcmp.eq.s32.totalorder %v146, %v138
    %vm204 = vcmp.eq.s32.totalorder %v150, %v138
    %vm205 = vcmp.eq.s32.totalorder %v154, %v138
    %vm206 = vcmp.eq.s32.totalorder %v158, %v138
    %vm207 = vcmp.eq.s32.totalorder %v146, %v139
    %vm208 = vcmp.eq.s32.totalorder %v150, %v139
    %vm209 = vcmp.eq.s32.totalorder %v154, %v139
    %vm210 = vcmp.eq.s32.totalorder %v158, %v139
    %vm211 = vcmp.eq.s32.totalorder %v146, %v140
    %vm212 = vcmp.eq.s32.totalorder %v150, %v140
    %vm213 = vcmp.eq.s32.totalorder %v154, %v140
    %vm214 = vcmp.eq.s32.totalorder %v158, %v140
    %vm215 = vcmp.eq.s32.totalorder %v146, %v141
    %vm216 = vcmp.eq.s32.totalorder %v150, %v141
    %vm217 = vcmp.eq.s32.totalorder %v154, %v141
    %vm218 = vcmp.eq.s32.totalorder %v158, %v141
    %vm219 = vcmp.eq.s32.totalorder %v146, %v142
    %vm220 = vcmp.eq.s32.totalorder %v150, %v142
    %vm221 = vcmp.eq.s32.totalorder %v154, %v142
    %vm222 = vcmp.eq.s32.totalorder %v158, %v142
    %v223 = vsel %vm159, 1, 0
    %v224 = vsel %vm160, 1, 0
    %v225 = vsel %vm161, 1, 0
    %v226 = vsel %vm162, 1, 0
    %v227 = vsel %vm163, 1, 0
    %v228 = vsel %vm164, 1, 0
    %v229 = vsel %vm165, 1, 0
    %v230 = vsel %vm166, 1, 0
    %v231 = vsel %vm167, 1, 0
    %v232 = vsel %vm168, 1, 0
    %v233 = vsel %vm169, 1, 0
    %v234 = vsel %vm170, 1, 0
    %v235 = vsel %vm171, 1, 0
    %v236 = vsel %vm172, 1, 0
    %v237 = vsel %vm173, 1, 0
    %v238 = vsel %vm174, 1, 0
    %v239 = vsel %vm175, 1, 0
    %v240 = vsel %vm176, 1, 0
    %v241 = vsel %vm177, 1, 0
    %v242 = vsel %vm178, 1, 0
    %v243 = vsel %vm179, 1, 0
    %v244 = vsel %vm180, 1, 0
    %v245 = vsel %vm181, 1, 0
    %v246 = vsel %vm182, 1, 0
    %v247 = vsel %vm183, 1, 0
    %v248 = vsel %vm184, 1, 0
    %v249 = vsel %vm185, 1, 0
    %v250 = vsel %vm186, 1, 0
    %v251 = vsel %vm187, 1, 0
    %v252 = vsel %vm188, 1, 0
    %v253 = vsel %vm189, 1, 0
    %v254 = vsel %vm190, 1, 0
    %v255 = vsel %vm191, 1, 0
    %v256 = vsel %vm192, 1, 0
    %v257 = vsel %vm193, 1, 0
    %v258 = vsel %vm194, 1, 0
    %v259 = vsel %vm195, 1, 0
    %v260 = vsel %vm196, 1, 0
    %v261 = vsel %vm197, 1, 0
    %v262 = vsel %vm198, 1, 0
    %v263 = vsel %vm199, 1, 0
    %v264 = vsel %vm200, 1, 0
    %v265 = vsel %vm201, 1, 0
    %v266 = vsel %vm202, 1, 0
    %v267 = vsel %vm203, 1, 0
    %v268 = vsel %vm204, 1, 0
    %v269 = vsel %vm205, 1, 0
    %v270 = vsel %vm206, 1, 0
    %v271 = vsel %vm207, 1, 0
    %v272 = vsel %vm208, 1, 0
    %v273 = vsel %vm209, 1, 0
    %v274 = vsel %vm210, 1, 0
    %v275 = vsel %vm211, 1, 0
    %v276 = vsel %vm212, 1, 0
    %v277 = vsel %vm213, 1, 0
    %v278 = vsel %vm214, 1, 0
    %v279 = vsel %vm215, 1, 0
    %v280 = vsel %vm216, 1, 0
    %v281 = vsel %vm217, 1, 0
    %v282 = vsel %vm218, 1, 0
    %v283 = vsel %vm219, 1, 0
    %v284 = vsel %vm220, 1, 0
    %v285 = vsel %vm221, 1, 0
    %v286 = vsel %vm222, 1, 0
    %v287 = vcvt.s32.f32 %v223
    %v288 = vcvt.s32.f32 %v224
    %v289 = vcvt.s32.f32 %v225
    %v290 = vcvt.s32.f32 %v226
    %v291 = vcvt.s32.f32 %v227
    %v292 = vcvt.s32.f32 %v228
    %v293 = vcvt.s32.f32 %v229
    %v294 = vcvt.s32.f32 %v230
    %v295 = vcvt.s32.f32 %v231
    %v296 = vcvt.s32.f32 %v232
    %v297 = vcvt.s32.f32 %v233
    %v298 = vcvt.s32.f32 %v234
    %v299 = vcvt.s32.f32 %v235
    %v300 = vcvt.s32.f32 %v236
    %v301 = vcvt.s32.f32 %v237
    %v302 = vcvt.s32.f32 %v238
    %v303 = vcvt.s32.f32 %v239
    %v304 = vcvt.s32.f32 %v240
    %v305 = vcvt.s32.f32 %v241
    %v306 = vcvt.s32.f32 %v242
    %v307 = vcvt.s32.f32 %v243
    %v308 = vcvt.s32.f32 %v244
    %v309 = vcvt.s32.f32 %v245
    %v310 = vcvt.s32.f32 %v246
    %v311 = vcvt.s32.f32 %v247
    %v312 = vcvt.s32.f32 %v248
    %v313 = vcvt.s32.f32 %v249
    %v314 = vcvt.s32.f32 %v250
    %v315 = vcvt.s32.f32 %v251
    %v316 = vcvt.s32.f32 %v252
    %v317 = vcvt.s32.f32 %v253
    %v318 = vcvt.s32.f32 %v254
    %v319 = vcvt.s32.f32 %v255
    %v320 = vcvt.s32.f32 %v256
    %v321 = vcvt.s32.f32 %v257
    %v322 = vcvt.s32.f32 %v258
    %v323 = vcvt.s32.f32 %v259
    %v324 = vcvt.s32.f32 %v260
    %v325 = vcvt.s32.f32 %v261
    %v326 = vcvt.s32.f32 %v262
    %v327 = vcvt.s32.f32 %v263
    %v328 = vcvt.s32.f32 %v264
    %v329 = vcvt.s32.f32 %v265
    %v330 = vcvt.s32.f32 %v266
    %v331 = vcvt.s32.f32 %v267
    %v332 = vcvt.s32.f32 %v268
    %v333 = vcvt.s32.f32 %v269
    %v334 = vcvt.s32.f32 %v270
    %v335 = vcvt.s32.f32 %v271
    %v336 = vcvt.s32.f32 %v272
    %v337 = vcvt.s32.f32 %v273
    %v338 = vcvt.s32.f32 %v274
    %v339 = vcvt.s32.f32 %v275
    %v340 = vcvt.s32.f32 %v276
    %v341 = vcvt.s32.f32 %v277
    %v342 = vcvt.s32.f32 %v278
    %v343 = vcvt.s32.f32 %v279
    %v344 = vcvt.s32.f32 %v280
    %v345 = vcvt.s32.f32 %v281
    %v346 = vcvt.s32.f32 %v282
    %v347 = vcvt.s32.f32 %v283
    %v348 = vcvt.s32.f32 %v284
    %v349 = vcvt.s32.f32 %v285
    %v350 = vcvt.s32.f32 %v286
    %v351 = vpack.c.bf16 %v291, %v287
    %v352 = vpack.c.bf16 %v292, %v288
    %v353 = vpack.c.bf16 %v293, %v289
    %v354 = vpack.c.bf16 %v294, %v290
    %v355 = vpack.c.bf16 %v299, %v295
    %v356 = vpack.c.bf16 %v300, %v296
    %v357 = vpack.c.bf16 %v301, %v297
    %v358 = vpack.c.bf16 %v302, %v298
    %v359 = vpack.c.bf16 %v307, %v303
    %v360 = vpack.c.bf16 %v308, %v304
    %v361 = vpack.c.bf16 %v309, %v305
    %v362 = vpack.c.bf16 %v310, %v306
    %v363 = vpack.c.bf16 %v315, %v311
    %v364 = vpack.c.bf16 %v316, %v312
    %v365 = vpack.c.bf16 %v317, %v313
    %v366 = vpack.c.bf16 %v318, %v314
    %v367 = vpack.c.bf16 %v323, %v319
    %v368 = vpack.c.bf16 %v324, %v320
    %v369 = vpack.c.bf16 %v325, %v321
    %v370 = vpack.c.bf16 %v326, %v322
    %v371 = vpack.c.bf16 %v331, %v327
    %v372 = vpack.c.bf16 %v332, %v328
    %v373 = vpack.c.bf16 %v333, %v329
    %v374 = vpack.c.bf16 %v334, %v330
    %v375 = vpack.c.bf16 %v339, %v335
    %v376 = vpack.c.bf16 %v340, %v336
    %v377 = vpack.c.bf16 %v341, %v337
    %v378 = vpack.c.bf16 %v342, %v338
    %v379 = vpack.c.bf16 %v347, %v343
    %v380 = vpack.c.bf16 %v348, %v344
    %v381 = vpack.c.bf16 %v349, %v345
    %v382 = vpack.c.bf16 %v350, %v346
    %v383 = vlaneseq
    %v384 = vshrl.u32 %v383, 7
    %v385 = vsub.s32 0, %v384
    %v386 = vrot.slane %v125, %v385
    %v387 = vlaneseq
    %v388 = vshrl.u32 %v387, 7
    %v389 = vsub.s32 1, %v388
    %v390 = vrot.slane %v125, %v389
    %v391 = vlaneseq
    %v392 = vshrl.u32 %v391, 7
    %v393 = vsub.s32 2, %v392
    %v394 = vrot.slane %v125, %v393
    %v395 = vlaneseq
    %v396 = vshrl.u32 %v395, 7
    %v397 = vsub.s32 3, %v396
    %v398 = vrot.slane %v125, %v397
    %vm399 = vcmp.eq.s32.totalorder %v386, %v127
    %vm400 = vcmp.eq.s32.totalorder %v390, %v127
    %vm401 = vcmp.eq.s32.totalorder %v394, %v127
    %vm402 = vcmp.eq.s32.totalorder %v398, %v127
    %vm403 = vcmp.eq.s32.totalorder %v386, %v128
    %vm404 = vcmp.eq.s32.totalorder %v390, %v128
    %vm405 = vcmp.eq.s32.totalorder %v394, %v128
    %vm406 = vcmp.eq.s32.totalorder %v398, %v128
    %vm407 = vcmp.eq.s32.totalorder %v386, %v129
    %vm408 = vcmp.eq.s32.totalorder %v390, %v129
    %vm409 = vcmp.eq.s32.totalorder %v394, %v129
    %vm410 = vcmp.eq.s32.totalorder %v398, %v129
    %vm411 = vcmp.eq.s32.totalorder %v386, %v130
    %vm412 = vcmp.eq.s32.totalorder %v390, %v130
    %vm413 = vcmp.eq.s32.totalorder %v394, %v130
    %vm414 = vcmp.eq.s32.totalorder %v398, %v130
    %vm415 = vcmp.eq.s32.totalorder %v386, %v131
    %vm416 = vcmp.eq.s32.totalorder %v390, %v131
    %vm417 = vcmp.eq.s32.totalorder %v394, %v131
    %vm418 = vcmp.eq.s32.totalorder %v398, %v131
    %vm419 = vcmp.eq.s32.totalorder %v386, %v132
    %vm420 = vcmp.eq.s32.totalorder %v390, %v132
    %vm421 = vcmp.eq.s32.totalorder %v394, %v132
    %vm422 = vcmp.eq.s32.totalorder %v398, %v132
    %vm423 = vcmp.eq.s32.totalorder %v386, %v133
    %vm424 = vcmp.eq.s32.totalorder %v390, %v133
    %vm425 = vcmp.eq.s32.totalorder %v394, %v133
    %vm426 = vcmp.eq.s32.totalorder %v398, %v133
    %vm427 = vcmp.eq.s32.totalorder %v386, %v134
    %vm428 = vcmp.eq.s32.totalorder %v390, %v134
    %vm429 = vcmp.eq.s32.totalorder %v394, %v134
    %vm430 = vcmp.eq.s32.totalorder %v398, %v134
    %vm431 = vcmp.eq.s32.totalorder %v386, %v135
    %vm432 = vcmp.eq.s32.totalorder %v390, %v135
    %vm433 = vcmp.eq.s32.totalorder %v394, %v135
    %vm434 = vcmp.eq.s32.totalorder %v398, %v135
    %vm435 = vcmp.eq.s32.totalorder %v386, %v136
    %vm436 = vcmp.eq.s32.totalorder %v390, %v136
    %vm437 = vcmp.eq.s32.totalorder %v394, %v136
    %vm438 = vcmp.eq.s32.totalorder %v398, %v136
    %vm439 = vcmp.eq.s32.totalorder %v386, %v137
    %vm440 = vcmp.eq.s32.totalorder %v390, %v137
    %vm441 = vcmp.eq.s32.totalorder %v394, %v137
    %vm442 = vcmp.eq.s32.totalorder %v398, %v137
    %vm443 = vcmp.eq.s32.totalorder %v386, %v138
    %vm444 = vcmp.eq.s32.totalorder %v390, %v138
    %vm445 = vcmp.eq.s32.totalorder %v394, %v138
    %vm446 = vcmp.eq.s32.totalorder %v398, %v138
    %vm447 = vcmp.eq.s32.totalorder %v386, %v139
    %vm448 = vcmp.eq.s32.totalorder %v390, %v139
    %vm449 = vcmp.eq.s32.totalorder %v394, %v139
    %vm450 = vcmp.eq.s32.totalorder %v398, %v139
    %vm451 = vcmp.eq.s32.totalorder %v386, %v140
    %vm452 = vcmp.eq.s32.totalorder %v390, %v140
    %vm453 = vcmp.eq.s32.totalorder %v394, %v140
    %vm454 = vcmp.eq.s32.totalorder %v398, %v140
    %vm455 = vcmp.eq.s32.totalorder %v386, %v141
    %vm456 = vcmp.eq.s32.totalorder %v390, %v141
    %vm457 = vcmp.eq.s32.totalorder %v394, %v141
    %vm458 = vcmp.eq.s32.totalorder %v398, %v141
    %vm459 = vcmp.eq.s32.totalorder %v386, %v142
    %vm460 = vcmp.eq.s32.totalorder %v390, %v142
    %vm461 = vcmp.eq.s32.totalorder %v394, %v142
    %vm462 = vcmp.eq.s32.totalorder %v398, %v142
    %v463 = vsel %vm399, 1, 0
    %v464 = vsel %vm400, 1, 0
    %v465 = vsel %vm401, 1, 0
    %v466 = vsel %vm402, 1, 0
    %v467 = vsel %vm403, 1, 0
    %v468 = vsel %vm404, 1, 0
    %v469 = vsel %vm405, 1, 0
    %v470 = vsel %vm406, 1, 0
    %v471 = vsel %vm407, 1, 0
    %v472 = vsel %vm408, 1, 0
    %v473 = vsel %vm409, 1, 0
    %v474 = vsel %vm410, 1, 0
    %v475 = vsel %vm411, 1, 0
    %v476 = vsel %vm412, 1, 0
    %v477 = vsel %vm413, 1, 0
    %v478 = vsel %vm414, 1, 0
    %v479 = vsel %vm415, 1, 0
    %v480 = vsel %vm416, 1, 0
    %v481 = vsel %vm417, 1, 0
    %v482 = vsel %vm418, 1, 0
    %v483 = vsel %vm419, 1, 0
    %v484 = vsel %vm420, 1, 0
    %v485 = vsel %vm421, 1, 0
    %v486 = vsel %vm422, 1, 0
    %v487 = vsel %vm423, 1, 0
    %v488 = vsel %vm424, 1, 0
    %v489 = vsel %vm425, 1, 0
    %v490 = vsel %vm426, 1, 0
    %v491 = vsel %vm427, 1, 0
    %v492 = vsel %vm428, 1, 0
    %v493 = vsel %vm429, 1, 0
    %v494 = vsel %vm430, 1, 0
    %v495 = vsel %vm431, 1, 0
    %v496 = vsel %vm432, 1, 0
    %v497 = vsel %vm433, 1, 0
    %v498 = vsel %vm434, 1, 0
    %v499 = vsel %vm435, 1, 0
    %v500 = vsel %vm436, 1, 0
    %v501 = vsel %vm437, 1, 0
    %v502 = vsel %vm438, 1, 0
    %v503 = vsel %vm439, 1, 0
    %v504 = vsel %vm440, 1, 0
    %v505 = vsel %vm441, 1, 0
    %v506 = vsel %vm442, 1, 0
    %v507 = vsel %vm443, 1, 0
    %v508 = vsel %vm444, 1, 0
    %v509 = vsel %vm445, 1, 0
    %v510 = vsel %vm446, 1, 0
    %v511 = vsel %vm447, 1, 0
    %v512 = vsel %vm448, 1, 0
    %v513 = vsel %vm449, 1, 0
    %v514 = vsel %vm450, 1, 0
    %v515 = vsel %vm451, 1, 0
    %v516 = vsel %vm452, 1, 0
    %v517 = vsel %vm453, 1, 0
    %v518 = vsel %vm454, 1, 0
    %v519 = vsel %vm455, 1, 0
    %v520 = vsel %vm456, 1, 0
    %v521 = vsel %vm457, 1, 0
    %v522 = vsel %vm458, 1, 0
    %v523 = vsel %vm459, 1, 0
    %v524 = vsel %vm460, 1, 0
    %v525 = vsel %vm461, 1, 0
    %v526 = vsel %vm462, 1, 0
    %v527 = vcvt.s32.f32 %v463
    %v528 = vcvt.s32.f32 %v464
    %v529 = vcvt.s32.f32 %v465
    %v530 = vcvt.s32.f32 %v466
    %v531 = vcvt.s32.f32 %v467
    %v532 = vcvt.s32.f32 %v468
    %v533 = vcvt.s32.f32 %v469
    %v534 = vcvt.s32.f32 %v470
    %v535 = vcvt.s32.f32 %v471
    %v536 = vcvt.s32.f32 %v472
    %v537 = vcvt.s32.f32 %v473
    %v538 = vcvt.s32.f32 %v474
    %v539 = vcvt.s32.f32 %v475
    %v540 = vcvt.s32.f32 %v476
    %v541 = vcvt.s32.f32 %v477
    %v542 = vcvt.s32.f32 %v478
    %v543 = vcvt.s32.f32 %v479
    %v544 = vcvt.s32.f32 %v480
    %v545 = vcvt.s32.f32 %v481
    %v546 = vcvt.s32.f32 %v482
    %v547 = vcvt.s32.f32 %v483
    %v548 = vcvt.s32.f32 %v484
    %v549 = vcvt.s32.f32 %v485
    %v550 = vcvt.s32.f32 %v486
    %v551 = vcvt.s32.f32 %v487
    %v552 = vcvt.s32.f32 %v488
    %v553 = vcvt.s32.f32 %v489
    %v554 = vcvt.s32.f32 %v490
    %v555 = vcvt.s32.f32 %v491
    %v556 = vcvt.s32.f32 %v492
    %v557 = vcvt.s32.f32 %v493
    %v558 = vcvt.s32.f32 %v494
    %v559 = vcvt.s32.f32 %v495
    %v560 = vcvt.s32.f32 %v496
    %v561 = vcvt.s32.f32 %v497
    %v562 = vcvt.s32.f32 %v498
    %v563 = vcvt.s32.f32 %v499
    %v564 = vcvt.s32.f32 %v500
    %v565 = vcvt.s32.f32 %v501
    %v566 = vcvt.s32.f32 %v502
    %v567 = vcvt.s32.f32 %v503
    %v568 = vcvt.s32.f32 %v504
    %v569 = vcvt.s32.f32 %v505
    %v570 = vcvt.s32.f32 %v506
    %v571 = vcvt.s32.f32 %v507
    %v572 = vcvt.s32.f32 %v508
    %v573 = vcvt.s32.f32 %v509
    %v574 = vcvt.s32.f32 %v510
    %v575 = vcvt.s32.f32 %v511
    %v576 = vcvt.s32.f32 %v512
    %v577 = vcvt.s32.f32 %v513
    %v578 = vcvt.s32.f32 %v514
    %v579 = vcvt.s32.f32 %v515
    %v580 = vcvt.s32.f32 %v516
    %v581 = vcvt.s32.f32 %v517
    %v582 = vcvt.s32.f32 %v518
    %v583 = vcvt.s32.f32 %v519
    %v584 = vcvt.s32.f32 %v520
    %v585 = vcvt.s32.f32 %v521
    %v586 = vcvt.s32.f32 %v522
    %v587 = vcvt.s32.f32 %v523
    %v588 = vcvt.s32.f32 %v524
    %v589 = vcvt.s32.f32 %v525
    %v590 = vcvt.s32.f32 %v526
    %v591 = vpack.c.bf16 %v531, %v527
    %v592 = vpack.c.bf16 %v532, %v528
    %v593 = vpack.c.bf16 %v533, %v529
    %v594 = vpack.c.bf16 %v534, %v530
    %v595 = vpack.c.bf16 %v539, %v535
    %v596 = vpack.c.bf16 %v540, %v536
    %v597 = vpack.c.bf16 %v541, %v537
    %v598 = vpack.c.bf16 %v542, %v538
    %v599 = vpack.c.bf16 %v547, %v543
    %v600 = vpack.c.bf16 %v548, %v544
    %v601 = vpack.c.bf16 %v549, %v545
    %v602 = vpack.c.bf16 %v550, %v546
    %v603 = vpack.c.bf16 %v555, %v551
    %v604 = vpack.c.bf16 %v556, %v552
    %v605 = vpack.c.bf16 %v557, %v553
    %v606 = vpack.c.bf16 %v558, %v554
    %v607 = vpack.c.bf16 %v563, %v559
    %v608 = vpack.c.bf16 %v564, %v560
    %v609 = vpack.c.bf16 %v565, %v561
    %v610 = vpack.c.bf16 %v566, %v562
    %v611 = vpack.c.bf16 %v571, %v567
    %v612 = vpack.c.bf16 %v572, %v568
    %v613 = vpack.c.bf16 %v573, %v569
    %v614 = vpack.c.bf16 %v574, %v570
    %v615 = vpack.c.bf16 %v579, %v575
    %v616 = vpack.c.bf16 %v580, %v576
    %v617 = vpack.c.bf16 %v581, %v577
    %v618 = vpack.c.bf16 %v582, %v578
    %v619 = vpack.c.bf16 %v587, %v583
    %v620 = vpack.c.bf16 %v588, %v584
    %v621 = vpack.c.bf16 %v589, %v585
    %v622 = vpack.c.bf16 %v590, %v586
    %v623 = vld [vmem:[#allocation7] sm:$0xff]
    %v624 = vld [vmem:[#allocation7 + $0x8] sm:$0xff]
    %v625 = vld [vmem:[#allocation7 + $0x10] sm:$0xff]
    %v626 = vld [vmem:[#allocation7 + $0x18] sm:$0xff]
    %v627 = vld [vmem:[#allocation7 + $0x20] sm:$0xff]
    %v628 = vld [vmem:[#allocation7 + $0x28] sm:$0xff]
    %v629 = vld [vmem:[#allocation7 + $0x30] sm:$0xff]
    %v630 = vld [vmem:[#allocation7 + $0x38] sm:$0xff]
    %v631 = vld [vmem:[#allocation7 + $0x40] sm:$0xff]
    %v632 = vld [vmem:[#allocation7 + $0x48] sm:$0xff]
    %v633 = vld [vmem:[#allocation7 + $0x50] sm:$0xff]
    %v634 = vld [vmem:[#allocation7 + $0x58] sm:$0xff]
    %v635 = vld [vmem:[#allocation7 + $0x60] sm:$0xff]
    %v636 = vld [vmem:[#allocation7 + $0x68] sm:$0xff]
    %v637 = vld [vmem:[#allocation7 + $0x70] sm:$0xff]
    %v638 = vld [vmem:[#allocation7 + $0x78] sm:$0xff]
    %639 = vmatprep.subr.bf16.mxu0 %v592
    %640 = vmatpush1.bf16.xpose.msra.mxu0 %v591
    %641 = vmatprep.subr.bf16.mxu0 %v596
    %642 = vmatpush1.bf16.xpose.msra.mxu0 %v595
    %643 = vmatprep.subr.bf16.mxu0 %v600
    %644 = vmatpush1.bf16.xpose.msra.mxu0 %v599
    %645 = vmatprep.subr.bf16.mxu0 %v604
    %646 = vmatpush1.bf16.xpose.msra.mxu0 %v603
    %647 = vmatprep.subr.bf16.mxu0 %v608
    %648 = vmatpush1.bf16.xpose.msra.mxu0 %v607
    %649 = vmatprep.subr.bf16.mxu0 %v612
    %650 = vmatpush1.bf16.xpose.msra.mxu0 %v611
    %651 = vmatprep.subr.bf16.mxu0 %v616
    %652 = vmatpush1.bf16.xpose.msra.mxu0 %v615
    %653 = vmatprep.subr.bf16.mxu0 %v620
    %654 = vmatpush1.bf16.xpose.msra.mxu0 %v619
    %655 = vmatprep.subr.bf16.mxu0 0
    %656 = vmatpush1.bf16.xpose.msra.mxu0 0
    %657 = vmatprep.subr.bf16.mxu0 0
    %658 = vmatpush1.bf16.xpose.msra.mxu0 0
    %659 = vmatprep.subr.bf16.mxu0 0
    %660 = vmatpush1.bf16.xpose.msra.mxu0 0
    %661 = vmatprep.subr.bf16.mxu0 0
    %662 = vmatpush1.bf16.xpose.msra.mxu0 0
    %663 = vmatprep.subr.bf16.mxu0 0
    %664 = vmatpush1.bf16.xpose.msra.mxu0 0
    %665 = vmatprep.subr.bf16.mxu0 0
    %666 = vmatpush1.bf16.xpose.msra.mxu0 0
    %667 = vmatprep.subr.bf16.mxu0 0
    %668 = vmatpush1.bf16.xpose.msra.mxu0 0
    %669 = vmatprep.subr.bf16.mxu0 0
    %670 = vmatpush1.bf16.xpose.msra.mxu0 0
    %671 = vmatprep.mubr.bf16.mxu0 %v352
    %672 = vmatmul.mubr.bf16.gmra.mrb[0].mxu0 %v351
    %v673 = vpop.f32.mrb[0].mxu0
    %v674 = vadd.f32 0.0, %v673
    %v675 = vpop.f32.mrb[0].mxu0
    %v676 = vpop.f32.mrb[0].mxu0
    %v677 = vadd.f32 0.0, %v676
    %v678 = vpop.f32.mrb[0].mxu0
    %679 = vmatprep.mubr.bf16.mxu0 %v356
    %680 = vmatmul.mubr.bf16.gmra.mrb[0].mxu0 %v355
    %v681 = vpop.f32.mrb[0].mxu0
    %v682 = vadd.f32 0.0, %v681
    %v683 = vpop.f32.mrb[0].mxu0
    %v684 = vpop.f32.mrb[0].mxu0
    %v685 = vadd.f32 0.0, %v684
    %v686 = vpop.f32.mrb[0].mxu0
    %687 = vmatprep.mubr.bf16.mxu0 %v360
    %688 = vmatmul.mubr.bf16.gmra.mrb[0].mxu0 %v359
    %v689 = vpop.f32.mrb[0].mxu0
    %v690 = vadd.f32 0.0, %v689
    %v691 = vpop.f32.mrb[0].mxu0
    %v692 = vpop.f32.mrb[0].mxu0
    %v693 = vadd.f32 0.0, %v692
    %v694 = vpop.f32.mrb[0].mxu0
    %695 = vmatprep.mubr.bf16.mxu0 %v364
    %696 = vmatmul.mubr.bf16.gmra.mrb[0].mxu0 %v363
    %v697 = vpop.f32.mrb[0].mxu0
    %v698 = vadd.f32 0.0, %v697
    %v699 = vpop.f32.mrb[0].mxu0
    %v700 = vpop.f32.mrb[0].mxu0
    %v701 = vadd.f32 0.0, %v700
    %v702 = vpop.f32.mrb[0].mxu0
    %703 = vmatprep.mubr.bf16.mxu0 %v368
    %704 = vmatmul.mubr.bf16.gmra.mrb[0].mxu0 %v367
    %v705 = vpop.f32.mrb[0].mxu0
    %v706 = vadd.f32 0.0, %v705
    %v707 = vpop.f32.mrb[0].mxu0
    %v708 = vpop.f32.mrb[0].mxu0
    %v709 = vadd.f32 0.0, %v708
    %v710 = vpop.f32.mrb[0].mxu0
    %711 = vmatprep.mubr.bf16.mxu0 %v372
    %712 = vmatmul.mubr.bf16.gmra.mrb[0].mxu0 %v371
    %v713 = vpop.f32.mrb[0].mxu0
    %v714 = vadd.f32 0.0, %v713
    %v715 = vpop.f32.mrb[0].mxu0
    %v716 = vpop.f32.mrb[0].mxu0
    %v717 = vadd.f32 0.0, %v716
    %v718 = vpop.f32.mrb[0].mxu0
    %719 = vmatprep.mubr.bf16.mxu0 %v376
    %720 = vmatmul.mubr.bf16.gmra.mrb[0].mxu0 %v375
    %v721 = vpop.f32.mrb[0].mxu0
    %v722 = vadd.f32 0.0, %v721
    %v723 = vpop.f32.mrb[0].mxu0
    %v724 = vpop.f32.mrb[0].mxu0
    %v725 = vadd.f32 0.0, %v724
    %v726 = vpop.f32.mrb[0].mxu0
    %727 = vmatprep.mubr.bf16.mxu0 %v380
    %728 = vmatmul.mubr.bf16.gmra.mrb[0].mxu0 %v379
    %v729 = vpop.f32.mrb[0].mxu0
    %v730 = vadd.f32 0.0, %v729
    %v731 = vpop.f32.mrb[0].mxu0
    %v732 = vpop.f32.mrb[0].mxu0
    %v733 = vadd.f32 0.0, %v732
    %v734 = vpop.f32.mrb[0].mxu0
    %735 = vdwg.mxu0
    %736 = vmatprep.subr.bf16.mxu0 %v594
    %737 = vmatpush1.bf16.xpose.msra.mxu0 %v593
    %738 = vmatprep.subr.bf16.mxu0 %v598
    %739 = vmatpush1.bf16.xpose.msra.mxu0 %v597
    %740 = vmatprep.subr.bf16.mxu0 %v602
    %741 = vmatpush1.bf16.xpose.msra.mxu0 %v601
    %742 = vmatprep.subr.bf16.mxu0 %v606
    %743 = vmatpush1.bf16.xpose.msra.mxu0 %v605
    %744 = vmatprep.subr.bf16.mxu0 %v610
    %745 = vmatpush1.bf16.xpose.msra.mxu0 %v609
    %746 = vmatprep.subr.bf16.mxu0 %v614
    %747 = vmatpush1.bf16.xpose.msra.mxu0 %v613
    %748 = vmatprep.subr.bf16.mxu0 %v618
    %749 = vmatpush1.bf16.xpose.msra.mxu0 %v617
    %750 = vmatprep.subr.bf16.mxu0 %v622
    %751 = vmatpush1.bf16.xpose.msra.mxu0 %v621
    %752 = vmatprep.subr.bf16.mxu0 0
    %753 = vmatpush1.bf16.xpose.msra.mxu0 0
    %754 = vmatprep.subr.bf16.mxu0 0
    %755 = vmatpush1.bf16.xpose.msra.mxu0 0
    %756 = vmatprep.subr.bf16.mxu0 0
    %757 = vmatpush1.bf16.xpose.msra.mxu0 0
    %758 = vmatprep.subr.bf16.mxu0 0
    %759 = vmatpush1.bf16.xpose.msra.mxu0 0
    %760 = vmatprep.subr.bf16.mxu0 0
    %761 = vmatpush1.bf16.xpose.msra.mxu0 0
    %762 = vmatprep.subr.bf16.mxu0 0
    %763 = vmatpush1.bf16.xpose.msra.mxu0 0
    %764 = vmatprep.subr.bf16.mxu0 0
    %765 = vmatpush1.bf16.xpose.msra.mxu0 0
    %766 = vmatprep.subr.bf16.mxu0 0
    %767 = vmatpush1.bf16.xpose.msra.mxu0 0
    %768 = vmatprep.mubr.bf16.mxu0 %v354
    %769 = vmatmul.mubr.bf16.gmra.mrb[0].mxu0 %v353
    %v770 = vpop.f32.mrb[0].mxu0
    %v771 = vadd.f32 %v674, %v770
    %v772 = vpop.f32.mrb[0].mxu0
    %v773 = vpop.f32.mrb[0].mxu0
    %v774 = vadd.f32 %v677, %v773
    %v775 = vpop.f32.mrb[0].mxu0
    %776 = vmatprep.mubr.bf16.mxu0 %v358
    %777 = vmatmul.mubr.bf16.gmra.mrb[0].mxu0 %v357
    %v778 = vpop.f32.mrb[0].mxu0
    %v779 = vadd.f32 %v682, %v778
    %v780 = vpop.f32.mrb[0].mxu0
    %v781 = vpop.f32.mrb[0].mxu0
    %v782 = vadd.f32 %v685, %v781
    %v783 = vpop.f32.mrb[0].mxu0
    %784 = vmatprep.mubr.bf16.mxu0 %v362
    %785 = vmatmul.mubr.bf16.gmra.mrb[0].mxu0 %v361
    %v786 = vpop.f32.mrb[0].mxu0
    %v787 = vadd.f32 %v690, %v786
    %v788 = vpop.f32.mrb[0].mxu0
    %v789 = vpop.f32.mrb[0].mxu0
    %v790 = vadd.f32 %v693, %v789
    %v791 = vpop.f32.mrb[0].mxu0
    %792 = vmatprep.mubr.bf16.mxu0 %v366
    %793 = vmatmul.mubr.bf16.gmra.mrb[0].mxu0 %v365
    %v794 = vpop.f32.mrb[0].mxu0
    %v795 = vadd.f32 %v698, %v794
    %v796 = vpop.f32.mrb[0].mxu0
    %v797 = vpop.f32.mrb[0].mxu0
    %v798 = vadd.f32 %v701, %v797
    %v799 = vpop.f32.mrb[0].mxu0
    %800 = vmatprep.mubr.bf16.mxu0 %v370
    %801 = vmatmul.mubr.bf16.gmra.mrb[0].mxu0 %v369
    %v802 = vpop.f32.mrb[0].mxu0
    %v803 = vadd.f32 %v706, %v802
    %v804 = vpop.f32.mrb[0].mxu0
    %v805 = vpop.f32.mrb[0].mxu0
    %v806 = vadd.f32 %v709, %v805
    %v807 = vpop.f32.mrb[0].mxu0
    %808 = vmatprep.mubr.bf16.mxu0 %v374
    %809 = vmatmul.mubr.bf16.gmra.mrb[0].mxu0 %v373
    %v810 = vpop.f32.mrb[0].mxu0
    %v811 = vadd.f32 %v714, %v810
    %v812 = vpop.f32.mrb[0].mxu0
    %v813 = vpop.f32.mrb[0].mxu0
    %v814 = vadd.f32 %v717, %v813
    %v815 = vpop.f32.mrb[0].mxu0
    %816 = vmatprep.mubr.bf16.mxu0 %v378
    %817 = vmatmul.mubr.bf16.gmra.mrb[0].mxu0 %v377
    %v818 = vpop.f32.mrb[0].mxu0
    %v819 = vadd.f32 %v722, %v818
    %v820 = vpop.f32.mrb[0].mxu0
    %v821 = vpop.f32.mrb[0].mxu0
    %v822 = vadd.f32 %v725, %v821
    %v823 = vpop.f32.mrb[0].mxu0
    %824 = vmatprep.mubr.bf16.mxu0 %v382
    %825 = vmatmul.mubr.bf16.gmra.mrb[0].mxu0 %v381
    %v826 = vpop.f32.mrb[0].mxu0
    %v827 = vadd.f32 %v730, %v826
    %v828 = vpop.f32.mrb[0].mxu0
    %v829 = vpop.f32.mrb[0].mxu0
    %v830 = vadd.f32 %v733, %v829
    %v831 = vpop.f32.mrb[0].mxu0
    %832 = vdwg.mxu0
    %v833 = vadd.f32 %v623, %v771
    %v834 = vadd.f32 %v624, %v774
    %v835 = vadd.f32 %v625, %v779
    %v836 = vadd.f32 %v626, %v782
    %v837 = vadd.f32 %v627, %v787
    %v838 = vadd.f32 %v628, %v790
    %v839 = vadd.f32 %v629, %v795
    %v840 = vadd.f32 %v630, %v798
    %v841 = vadd.f32 %v631, %v803
    %v842 = vadd.f32 %v632, %v806
    %v843 = vadd.f32 %v633, %v811
    %v844 = vadd.f32 %v634, %v814
    %v845 = vadd.f32 %v635, %v819
    %v846 = vadd.f32 %v636, %v822
    %v847 = vadd.f32 %v637, %v827
    %v848 = vadd.f32 %v638, %v830
    %849 = vst [vmem:[#allocation7] sm:$0xff] %v833
    %850 = vst [vmem:[#allocation7 + $0x8] sm:$0xff] %v834
    %851 = vst [vmem:[#allocation7 + $0x10] sm:$0xff] %v835
    %852 = vst [vmem:[#allocation7 + $0x18] sm:$0xff] %v836
    %853 = vst [vmem:[#allocation7 + $0x20] sm:$0xff] %v837
    %854 = vst [vmem:[#allocation7 + $0x28] sm:$0xff] %v838
    %855 = vst [vmem:[#allocation7 + $0x30] sm:$0xff] %v839
    %856 = vst [vmem:[#allocation7 + $0x38] sm:$0xff] %v840
    %857 = vst [vmem:[#allocation7 + $0x40] sm:$0xff] %v841
    %858 = vst [vmem:[#allocation7 + $0x48] sm:$0xff] %v842
    %859 = vst [vmem:[#allocation7 + $0x50] sm:$0xff] %v843
    %860 = vst [vmem:[#allocation7 + $0x58] sm:$0xff] %v844
    %861 = vst [vmem:[#allocation7 + $0x60] sm:$0xff] %v845
    %862 = vst [vmem:[#allocation7 + $0x68] sm:$0xff] %v846
    %863 = vst [vmem:[#allocation7 + $0x70] sm:$0xff] %v847
    %864 = vst [vmem:[#allocation7 + $0x78] sm:$0xff] %v848
    // Predicated region
    $region18: #{tpu_custom_call.1} parent=1 // pred_check
      _
    $region19: #{tpu_custom_call.1} parent=1 // pred_check_branch
      %866 = sbr.rel (0) target = $region21
    $region20: #{tpu_custom_call.1} parent=1 // pred_region
      %s868 = ssub.s32 2048, 2048
      %869 = vsyncadd [#allocation6], %s868
      %s870 = sshll.u32 [#allocation7], 4
      %s871 = int_to_ptr.vmem [resolvable:$true] %s870
      %876 = dma.vmem_to_hbm [thread:$0]  %s871, 2048, %s3, [#allocation6], 128, 128, 8
    $region21: #{tpu_custom_call.1} parent=1 // pred_fallthru
      _
    // Predicated region
    $region22: #{tpu_custom_call.1} parent=1 // pred_check
      _
    $region23: #{tpu_custom_call.1} parent=1 // pred_check_branch
      %878 = sbr.rel (0) target = $region25
    $region24: #{tpu_custom_call.1} parent=1 // pred_region
      %879 = dma.done [#allocation6], 2048
    $region25: #{tpu_custom_call.1} parent=1 // pred_fallthru
      _
    %880 = vsyncpa [#allocation5], 1
    %881 = vsyncpa [#allocation6], 1

</llo_original>
